<compile_context>
chip_gen: v7x
topology: tpu7x:2x2x1
jax: 0.10.0
libtpu: 0.0.40
codegen_flags: <defaults>
</compile_context>

<pallas_src>
import jax
import jax.numpy as jnp
from jax import lax
from jax.experimental import pallas as pl
from jax.experimental.pallas import tpu as pltpu


def _vmem_limit_bytes():
    """VMEM request with headroom (never ask for all of v7x's 64 MiB/TC)."""
    try:
        return int(pltpu.get_tpu_info().vmem_capacity_bytes * 3 // 4)
    except Exception:
        return 48 * 1024 * 1024


# ----------------------------------------------------------------------------
# Fused kernel: n_message_passing GAT layers + MIL attention pooling + classifier.
# ----------------------------------------------------------------------------
def _make_fused_kernel(num_layers):
    f32 = jnp.float32
    bf16 = jnp.bfloat16

    def kernel(scal_ref, x_ref, adj_ref, eattr_ref, seg_ref,
               w1_ref, w2_ref, w3_ref, bias_ref,
               wa1_ref, hrows_ref, wc_ref, bc_ref,
               yhat_ref, a_ref):
        fp = x_ref.shape[1]          # padded feature width (uniform across layers)
        mlp = w2_ref.shape[1]
        aug = w3_ref.shape[2]        # fp + 2 : [h | h.a_dst + c0 | 1]

        adj = adj_ref[...]           # (N, N) bf16 0/1 mask (row = target, col = source)
        eattr = eattr_ref[...]       # (N, N) bf16 edge attribute (edge_dims == 1)
        # Additive -inf mask, built ONCE and reused by every layer (cheaper than a
        # compare+select per layer).  It is applied AFTER the LeakyReLU, as in the
        # reference (the edge term is added to non-edges too, then masked out).
        neg = (adj.astype(f32) - 1.0) * 1e30
        x = x_ref[...]               # (N, fp) f32, stays resident across layers

        # ---- message-passing layers (statically unrolled) --------------------
        for i in range(num_layers):
            w1 = w1_ref[i]                        # (fp, mlp)  bf16
            w2 = w2_ref[i]                        # (mlp, mlp) bf16
            w3a = w3_ref[i]                       # (mlp, aug) bf16  (a_dst/c0/ones folded)
            bl = bias_ref[i]                      # (4, bw)    f32
            b1 = bl[0:1, :mlp]
            b2 = bl[1:2, :mlp]
            b3a = bl[2:3, :aug]
            a_src = bl[3:4, :aug].astype(bf16)    # zero in the two augmented columns
            c1 = scal_ref[i]                      # sum(we * a_e)

            # Node MLP: Fin -> mlp -> mlp -> Fout+2 (bf16 operands, f32 accumulation).
            h = jnp.maximum(jnp.dot(x.astype(bf16), w1,
                                    preferred_element_type=f32) + b1, 0.0)
            h = jnp.maximum(jnp.dot(h.astype(bf16), w2,
                                    preferred_element_type=f32) + b2, 0.0)
            h_aug = jnp.dot(h.astype(bf16), w3a,
                            preferred_element_type=f32) + b3a            # (N, aug)
            h_bf = h_aug.astype(bf16)

            s_dst = h_aug[:, fp:fp + 1]                                   # (N, 1) = h.a_dst + c0
            s_src = lax.dot_general(a_src, h_bf, (((1,), (1,)), ((), ())),
                                    preferred_element_type=f32)           # (1, N) on the MXU

            logits = s_dst + s_src + eattr * c1                           # (N, N) f32
            logits = jnp.maximum(logits, 0.2 * logits)                    # LeakyReLU(0.2)
            logits = logits + neg                                         # mask non-edges
            # Clamping the row max keeps rows with no in-edges (all ~ -1e30) from
            # softmaxing to a uniform distribution: their exps underflow to exactly 0
            # and the aggregated row is 0, matching scatter-softmax semantics.
            m = jnp.maximum(jnp.max(logits, axis=-1, keepdims=True), -1e29)
            p = jnp.exp(logits - m)                                       # (N, N) f32

            # Aggregation + softmax denominator in ONE MXU matmul: the last column of
            # h_aug is all-ones, so z[:, fp+1] is the row-sum of p (no XLU reduce and
            # no N^2 normalisation multiply).
            z = jnp.dot(p.astype(bf16), h_bf, preferred_element_type=f32)  # (N, aug)
            denom = jnp.maximum(z[:, fp + 1:fp + 2], 1e-16)
            x = z[:, :fp] * pl.reciprocal(denom, approx=True)              # (N, fp)

        # ---- gated-attention MIL pooling + classifier head -------------------
        seg = seg_ref[...]                                                 # (B, N) one-hot f32
        hr = hrows_ref[...]                                                # (2, D) f32
        ba1 = hr[0:1, :]
        wa2t = hr[1:2, :]
        ba2 = scal_ref[num_layers]

        hA = jnp.tanh(jnp.dot(x.astype(bf16), wa1_ref[...],
                              preferred_element_type=f32) + ba1)           # (N, D)
        logit = lax.dot_general(wa2t, hA, (((1,), (1,)), ((), ())),
                                preferred_element_type=f32) + ba2          # (1, N)

        # Per-graph softmax over nodes — contractions on the MXU, no transposes.
        masked = jnp.where(seg > 0, logit, -1e30)                          # (B, N)
        seg_max = jnp.max(masked, axis=-1, keepdims=True)                  # (B, 1)
        node_max = lax.dot_general(seg_max, seg, (((0,), (0,)), ((), ())),
                                   preferred_element_type=f32)             # (1, N)
        e = jnp.exp(logit - node_max)                                      # (1, N)
        seg_sum = lax.dot_general(seg, e, (((1,), (1,)), ((), ())),
                                  preferred_element_type=f32)              # (B, 1)
        node_sum = lax.dot_general(seg_sum, seg, (((0,), (0,)), ((), ())),
                                   preferred_element_type=f32)             # (1, N)
        # Exact normalisation (review: returned A must sum to 1 per graph).
        a_row = e / jnp.maximum(node_sum, 1e-16)                           # (1, N)
        a_ref[...] = a_row                                                 # lane-dense store

        # Attention-weighted scatter_add -> per-graph embedding, then classifier.
        m_pool = jnp.dot(seg * a_row, x, preferred_element_type=f32)       # (B, fp)
        y = jnp.dot(m_pool, wc_ref[...], preferred_element_type=f32) + bc_ref[...]
        yhat_ref[...] = 1.0 / (1.0 + jnp.exp(-y))                          # Sigmoid

    return kernel


# ----------------------------------------------------------------------------
# Wrapper: pack / pad parameters, launch the fused kernel.
# ----------------------------------------------------------------------------
@jax.jit
def graph_att_surv_forward(x, adj, eattr, seg, layers, head):
    f32, bf16 = jnp.float32, jnp.bfloat16
    n = x.shape[0]
    b = seg.shape[0]
    num_layers = len(layers)
    out_features = head["wc"].shape[1]

    mlp = layers[0]["w2"].shape[0]
    # Uniform padded feature width: lets all per-layer weights stack into single
    # arrays and avoids lane-masked vregs on the 17-wide input / 8-wide output.
    fp = max([x.shape[1]] + [p["w3"].shape[1] for p in layers])
    aug = fp + 2
    bw = max(mlp, aug)

    def pad2(a, rows, cols):
        return jnp.pad(a, ((0, rows - a.shape[0]), (0, cols - a.shape[1])))

    w1s, w2s, w3s, biases, c1s = [], [], [], [], []
    for p in layers:
        # Edge-score scalars: a_e . (e_ij * We + be) == eattr * c1 + c0 (edge_dims == 1).
        c1 = jnp.sum(p["we"] * p["a_e"])
        c0 = jnp.sum(p["be"] * p["a_e"])
        w3_dst = p["w3"] @ jnp.transpose(p["a_dst"])                      # (mlp, 1)
        b3_dst = p["b3"] @ jnp.transpose(p["a_dst"]) + c0                 # (1, 1)
        w3aug = jnp.concatenate([pad2(p["w3"], mlp, fp), w3_dst,
                                 jnp.zeros((mlp, 1), f32)], axis=1)       # (mlp, aug)
        b3aug = jnp.concatenate([pad2(p["b3"], 1, fp), b3_dst,
                                 jnp.ones((1, 1), f32)], axis=1)          # (1, aug)
        w1s.append(pad2(p["w1"], fp, mlp))
        w2s.append(p["w2"])
        w3s.append(w3aug)
        biases.append(jnp.concatenate([pad2(p["b1"], 1, bw),
                                       pad2(p["b2"], 1, bw),
                                       pad2(b3aug, 1, bw),
                                       pad2(p["a_src"], 1, bw)], axis=0))  # (4, bw)
        c1s.append(c1)

    scal = jnp.stack(c1s + [head["ba2"][0, 0]]).astype(f32)               # (L+1,) SMEM scalars
    w1_st = jnp.stack(w1s).astype(bf16)                                   # (L, fp, mlp)
    w2_st = jnp.stack(w2s).astype(bf16)                                   # (L, mlp, mlp)
    w3_st = jnp.stack(w3s).astype(bf16)                                   # (L, mlp, aug)
    bias_st = jnp.stack(biases).astype(f32)                               # (L, 4, bw)

    wa1 = pad2(head["wa1"], fp, head["wa1"].shape[1]).astype(bf16)        # (fp, D)
    hrows = jnp.concatenate([head["ba1"],
                             jnp.transpose(head["wa2"])], axis=0).astype(f32)  # (2, D)
    wc = pad2(head["wc"], fp, out_features).astype(f32)                   # (fp, out)
    bc = head["bc"].astype(f32)                                           # (1, out)
    x_pad = pad2(x, n, fp).astype(f32)                                    # (N, fp)

    smem = pl.BlockSpec(memory_space=pltpu.MemorySpace.SMEM)
    vmem = pl.BlockSpec(memory_space=pltpu.MemorySpace.VMEM)

    y_hat, a_row = pl.pallas_call(
        _make_fused_kernel(num_layers),
        out_shape=(jax.ShapeDtypeStruct((b, out_features), f32),
                   jax.ShapeDtypeStruct((1, n), f32)),
        in_specs=[smem] + [vmem] * 12,
        out_specs=(vmem, vmem),
        compiler_params=pltpu.CompilerParams(vmem_limit_bytes=_vmem_limit_bytes()),
    )(scal, x_pad, adj.astype(bf16), eattr.astype(bf16), seg.astype(f32),
      w1_st, w2_st, w3_st, bias_st, wa1, hrows, wc, bc)
    return y_hat, a_row.reshape(-1)   # A returned flattened, like the PyTorch module


# ----------------------------------------------------------------------------
# Parameter construction (deterministic, synthetic).
# ----------------------------------------------------------------------------
def init_params(key, in_features=17, hidden_features=64, out_graph_features=8,
                out_features=1, edge_dims=1, n_message_passing=4,
                mlp_features=64, attention_features=128):
    assert edge_dims == 1
    hidden = hidden_features if n_message_passing > 1 else out_graph_features

    def dense(k, shape, scale=0.1):
        return scale * jax.random.normal(k, shape, dtype=jnp.float32)

    layers = []
    f_in = in_features
    for i in range(n_message_passing):
        f_out = out_graph_features if i == n_message_passing - 1 else hidden
        key, *ks = jax.random.split(key, 12)
        layers.append(dict(
            w1=dense(ks[0], (f_in, mlp_features)),        b1=dense(ks[1], (1, mlp_features)),
            w2=dense(ks[2], (mlp_features, mlp_features)), b2=dense(ks[3], (1, mlp_features)),
            w3=dense(ks[4], (mlp_features, f_out)),        b3=dense(ks[5], (1, f_out)),
            we=dense(ks[6], (1, f_out)),                   be=dense(ks[7], (1, f_out)),
            a_src=dense(ks[8], (1, f_out)),
            a_dst=dense(ks[9], (1, f_out)),
            a_e=dense(ks[10], (1, f_out)),
        ))
        f_in = f_out

    key, k1, k2, k3, k4, k5, k6 = jax.random.split(key, 7)
    head = dict(
        wa1=dense(k1, (out_graph_features, attention_features)),
        ba1=dense(k2, (1, attention_features)),
        wa2=dense(k3, (attention_features, 1)),
        ba2=dense(k4, (1, 1)),
        wc=dense(k5, (out_graph_features, out_features)),
        bc=dense(k6, (1, out_features)),
    )
    return layers, head


# ----------------------------------------------------------------------------
if __name__ == "__main__":
    key = jax.random.PRNGKey(0)
    N, B = 16, 2                 # 16 nodes, 2 graphs of 8 nodes each
    IN_FEATURES = 17

    k_x, k_e, k_p = jax.random.split(key, 3)
    x = jax.random.normal(k_x, (N, IN_FEATURES), dtype=jnp.float32)

    # batch assignment: first 8 nodes -> graph 0, last 8 -> graph 1
    batch = jnp.concatenate([jnp.zeros(8, jnp.int32), jnp.ones(8, jnp.int32)])
    seg = jnp.zeros((B, N), jnp.float32).at[batch, jnp.arange(N)].set(1.0)

    # Dense adjacency: ring within each graph + self-loops (no cross-graph edges).
    adj = jnp.zeros((N, N), jnp.float32)
    for g in range(B):
        base = g * 8
        for i in range(8):
            adj = adj.at[base + i, base + i].set(1.0)                 # self loop
            adj = adj.at[base + i, base + (i + 1) % 8].set(1.0)       # ring edges
            adj = adj.at[base + i, base + (i - 1) % 8].set(1.0)
    eattr = jax.random.uniform(k_e, (N, N), dtype=jnp.float32) * adj   # edge_dims = 1

    layers, head = init_params(k_p, in_features=IN_FEATURES)

    y_hat, A = graph_att_surv_forward(x, adj, eattr, seg, layers, head)
    jax.block_until_ready((y_hat, A))

    assert y_hat.shape == (B, 1)
    assert A.shape == (N,)
    assert bool(jnp.all(jnp.isfinite(y_hat))) and bool(jnp.all(jnp.isfinite(A)))
    assert bool(jnp.all(y_hat > 0.0)) and bool(jnp.all(y_hat < 1.0))
    # Per-graph attention weights must sum to ~1 (segment softmax check); the head
    # normalisation now uses an exact divide, so the tolerance is tight again.
    seg_sums = seg @ A
    assert bool(jnp.max(jnp.abs(seg_sums - 1.0)) < 1e-3), seg_sums

    print("KERNEL_OK")
</pallas_src>

<mosaic_0001>
module attributes {stable_mosaic.version = 11 : i64} {
  func.func @kernel(%arg0: memref<5xf32, #tpu.memory_space<smem>>, %arg1: memref<16x64xf32, #tpu.memory_space<vmem>>, %arg2: memref<16x16xbf16, #tpu.memory_space<vmem>>, %arg3: memref<16x16xbf16, #tpu.memory_space<vmem>>, %arg4: memref<2x16xf32, #tpu.memory_space<vmem>>, %arg5: memref<4x64x64xbf16, #tpu.memory_space<vmem>>, %arg6: memref<4x64x64xbf16, #tpu.memory_space<vmem>>, %arg7: memref<4x64x66xbf16, #tpu.memory_space<vmem>>, %arg8: memref<4x4x66xf32, #tpu.memory_space<vmem>>, %arg9: memref<64x128xbf16, #tpu.memory_space<vmem>>, %arg10: memref<2x128xf32, #tpu.memory_space<vmem>>, %arg11: memref<64x1xf32, #tpu.memory_space<vmem>>, %arg12: memref<1x1xf32, #tpu.memory_space<vmem>>, %arg13: memref<2x1xf32, #tpu.memory_space<vmem>>, %arg14: memref<1x16xf32, #tpu.memory_space<vmem>>) attributes {dimension_semantics = [], scalar_prefetch = 0 : i64, scratch_operands = 0 : i64, tpu.core_type = #tpu.core_type<tc>} {
    %c0 = arith.constant 0 : index
    %c0_0 = arith.constant 0 : index
    %0 = vector.load %arg2[%c0, %c0_0] : memref<16x16xbf16, #tpu.memory_space<vmem>>, vector<16x16xbf16>
    %c0_1 = arith.constant 0 : index
    %c0_2 = arith.constant 0 : index
    %1 = vector.load %arg3[%c0_1, %c0_2] : memref<16x16xbf16, #tpu.memory_space<vmem>>, vector<16x16xbf16>
    %2 = arith.extf %0 : vector<16x16xbf16> to vector<16x16xf32>
    %cst = arith.constant 1.000000e+00 : f32
    %3 = vector.broadcast %cst : f32 to vector<16x16xf32>
    %4 = arith.subf %2, %3 : vector<16x16xf32>
    %cst_3 = arith.constant 1.000000e+30 : f32
    %5 = vector.broadcast %cst_3 : f32 to vector<16x16xf32>
    %6 = arith.mulf %4, %5 : vector<16x16xf32>
    %c0_4 = arith.constant 0 : index
    %c0_5 = arith.constant 0 : index
    %7 = vector.load %arg1[%c0_4, %c0_5] : memref<16x64xf32, #tpu.memory_space<vmem>>, vector<16x64xf32>
    %c0_6 = arith.constant 0 : index
    %c0_7 = arith.constant 0 : index
    %c0_8 = arith.constant 0 : index
    %8 = vector.load %arg5[%c0_6, %c0_7, %c0_8] : memref<4x64x64xbf16, #tpu.memory_space<vmem>>, vector<1x64x64xbf16>
    %9 = vector.shape_cast %8 : vector<1x64x64xbf16> to vector<64x64xbf16>
    %c0_9 = arith.constant 0 : index
    %c0_10 = arith.constant 0 : index
    %c0_11 = arith.constant 0 : index
    %10 = vector.load %arg6[%c0_9, %c0_10, %c0_11] : memref<4x64x64xbf16, #tpu.memory_space<vmem>>, vector<1x64x64xbf16>
    %11 = vector.shape_cast %10 : vector<1x64x64xbf16> to vector<64x64xbf16>
    %c0_12 = arith.constant 0 : index
    %c0_13 = arith.constant 0 : index
    %c0_14 = arith.constant 0 : index
    %12 = vector.load %arg7[%c0_12, %c0_13, %c0_14] : memref<4x64x66xbf16, #tpu.memory_space<vmem>>, vector<1x64x66xbf16>
    %13 = vector.shape_cast %12 : vector<1x64x66xbf16> to vector<64x66xbf16>
    %c0_15 = arith.constant 0 : index
    %c0_16 = arith.constant 0 : index
    %c0_17 = arith.constant 0 : index
    %14 = vector.load %arg8[%c0_15, %c0_16, %c0_17] : memref<4x4x66xf32, #tpu.memory_space<vmem>>, vector<1x4x66xf32>
    %15 = vector.shape_cast %14 : vector<1x4x66xf32> to vector<4x66xf32>
    %16 = vector.extract_strided_slice %15 {offsets = [0, 0], sizes = [1, 64], strides = [1, 1]} : vector<4x66xf32> to vector<1x64xf32>
    %17 = vector.extract_strided_slice %15 {offsets = [1, 0], sizes = [1, 64], strides = [1, 1]} : vector<4x66xf32> to vector<1x64xf32>
    %18 = vector.extract_strided_slice %15 {offsets = [2, 0], sizes = [1, 66], strides = [1, 1]} : vector<4x66xf32> to vector<1x66xf32>
    %19 = vector.extract_strided_slice %15 {offsets = [3, 0], sizes = [1, 66], strides = [1, 1]} : vector<4x66xf32> to vector<1x66xf32>
    %20 = arith.truncf %19 : vector<1x66xf32> to vector<1x66xbf16>
    %c0_18 = arith.constant 0 : index
    %21 = memref.load %arg0[%c0_18] : memref<5xf32, #tpu.memory_space<smem>>
    %22 = arith.truncf %7 : vector<16x64xf32> to vector<16x64xbf16>
    %cst_19 = arith.constant dense<0.000000e+00> : vector<16x64xf32>
    %23 = tpu.matmul %22, %9, %cst_19 {dimension_numbers = #tpu.dot_dimension_numbers<[1], [0], [0], [1], [0, 0, 1, 1], [], []>} : vector<16x64xbf16>, vector<64x64xbf16>, vector<16x64xf32> -> vector<16x64xf32>
    %24 = vector.broadcast %16 : vector<1x64xf32> to vector<16x64xf32>
    %25 = arith.addf %23, %24 : vector<16x64xf32>
    %cst_20 = arith.constant 0.000000e+00 : f32
    %26 = vector.broadcast %cst_20 : f32 to vector<16x64xf32>
    %27 = arith.maximumf %25, %26 : vector<16x64xf32>
    %28 = arith.truncf %27 : vector<16x64xf32> to vector<16x64xbf16>
    %cst_21 = arith.constant dense<0.000000e+00> : vector<16x64xf32>
    %29 = tpu.matmul %28, %11, %cst_21 {dimension_numbers = #tpu.dot_dimension_numbers<[1], [0], [0], [1], [0, 0, 1, 1], [], []>} : vector<16x64xbf16>, vector<64x64xbf16>, vector<16x64xf32> -> vector<16x64xf32>
    %30 = vector.broadcast %17 : vector<1x64xf32> to vector<16x64xf32>
    %31 = arith.addf %29, %30 : vector<16x64xf32>
    %cst_22 = arith.constant 0.000000e+00 : f32
    %32 = vector.broadcast %cst_22 : f32 to vector<16x64xf32>
    %33 = arith.maximumf %31, %32 : vector<16x64xf32>
    %34 = arith.truncf %33 : vector<16x64xf32> to vector<16x64xbf16>
    %cst_23 = arith.constant dense<0.000000e+00> : vector<16x66xf32>
    %35 = tpu.matmul %34, %13, %cst_23 {dimension_numbers = #tpu.dot_dimension_numbers<[1], [0], [0], [1], [0, 0, 1, 1], [], []>} : vector<16x64xbf16>, vector<64x66xbf16>, vector<16x66xf32> -> vector<16x66xf32>
    %36 = vector.broadcast %18 : vector<1x66xf32> to vector<16x66xf32>
    %37 = arith.addf %35, %36 : vector<16x66xf32>
    %38 = arith.truncf %37 : vector<16x66xf32> to vector<16x66xbf16>
    %39 = vector.extract_strided_slice %37 {offsets = [0, 64], sizes = [16, 1], strides = [1, 1]} : vector<16x66xf32> to vector<16x1xf32>
    %cst_24 = arith.constant dense<0.000000e+00> : vector<1x16xf32>
    %40 = tpu.matmul %20, %38, %cst_24 {dimension_numbers = #tpu.dot_dimension_numbers<[1], [1], [0], [0], [0, 0, 1, 0], [], []>} : vector<1x66xbf16>, vector<16x66xbf16>, vector<1x16xf32> -> vector<1x16xf32>
    %41 = vector.broadcast %39 : vector<16x1xf32> to vector<16x16xf32>
    %42 = vector.broadcast %40 : vector<1x16xf32> to vector<16x16xf32>
    %43 = arith.addf %41, %42 : vector<16x16xf32>
    %44 = arith.extf %1 : vector<16x16xbf16> to vector<16x16xf32>
    %45 = vector.broadcast %21 : f32 to vector<16x16xf32>
    %46 = arith.mulf %44, %45 : vector<16x16xf32>
    %47 = arith.addf %43, %46 : vector<16x16xf32>
    %cst_25 = arith.constant 2.000000e-01 : f32
    %48 = vector.broadcast %cst_25 : f32 to vector<16x16xf32>
    %49 = arith.mulf %48, %47 : vector<16x16xf32>
    %50 = arith.maximumf %47, %49 : vector<16x16xf32>
    %51 = arith.addf %50, %6 : vector<16x16xf32>
    %cst_26 = arith.constant dense<0xFF800000> : vector<16xf32>
    %52 = vector.multi_reduction <maximumf>, %51, %cst_26 [1] : vector<16x16xf32> to vector<16xf32>
    %53 = vector.shape_cast %52 : vector<16xf32> to vector<16x1xf32>
    %cst_27 = arith.constant -1.000000e+29 : f32
    %54 = vector.broadcast %cst_27 : f32 to vector<16x1xf32>
    %55 = arith.maximumf %53, %54 : vector<16x1xf32>
    %56 = vector.broadcast %55 : vector<16x1xf32> to vector<16x16xf32>
    %57 = arith.subf %51, %56 : vector<16x16xf32>
    %58 = math.exp %57 : vector<16x16xf32>
    %59 = arith.truncf %58 : vector<16x16xf32> to vector<16x16xbf16>
    %cst_28 = arith.constant dense<0.000000e+00> : vector<16x66xf32>
    %60 = tpu.matmul %59, %38, %cst_28 {dimension_numbers = #tpu.dot_dimension_numbers<[1], [0], [0], [1], [0, 0, 1, 1], [], []>} : vector<16x16xbf16>, vector<16x66xbf16>, vector<16x66xf32> -> vector<16x66xf32>
    %61 = vector.extract_strided_slice %60 {offsets = [0, 65], sizes = [16, 1], strides = [1, 1]} : vector<16x66xf32> to vector<16x1xf32>
    %cst_29 = arith.constant 1.000000e-16 : f32
    %62 = vector.broadcast %cst_29 : f32 to vector<16x1xf32>
    %63 = arith.maximumf %61, %62 : vector<16x1xf32>
    %64 = vector.extract_strided_slice %60 {offsets = [0, 0], sizes = [16, 64], strides = [1, 1]} : vector<16x66xf32> to vector<16x64xf32>
    %65 = tpu.reciprocal %63 {approx = true} : vector<16x1xf32> -> vector<16x1xf32>
    %66 = vector.broadcast %65 : vector<16x1xf32> to vector<16x64xf32>
    %67 = arith.mulf %64, %66 : vector<16x64xf32>
    %c1 = arith.constant 1 : index
    %c0_30 = arith.constant 0 : index
    %c0_31 = arith.constant 0 : index
    %68 = vector.load %arg5[%c1, %c0_30, %c0_31] : memref<4x64x64xbf16, #tpu.memory_space<vmem>>, vector<1x64x64xbf16>
    %69 = vector.shape_cast %68 : vector<1x64x64xbf16> to vector<64x64xbf16>
    %c1_32 = arith.constant 1 : index
    %c0_33 = arith.constant 0 : index
    %c0_34 = arith.constant 0 : index
    %70 = vector.load %arg6[%c1_32, %c0_33, %c0_34] : memref<4x64x64xbf16, #tpu.memory_space<vmem>>, vector<1x64x64xbf16>
    %71 = vector.shape_cast %70 : vector<1x64x64xbf16> to vector<64x64xbf16>
    %c1_35 = arith.constant 1 : index
    %c0_36 = arith.constant 0 : index
    %c0_37 = arith.constant 0 : index
    %72 = vector.load %arg7[%c1_35, %c0_36, %c0_37] : memref<4x64x66xbf16, #tpu.memory_space<vmem>>, vector<1x64x66xbf16>
    %73 = vector.shape_cast %72 : vector<1x64x66xbf16> to vector<64x66xbf16>
    %c1_38 = arith.constant 1 : index
    %c0_39 = arith.constant 0 : index
    %c0_40 = arith.constant 0 : index
    %74 = vector.load %arg8[%c1_38, %c0_39, %c0_40] : memref<4x4x66xf32, #tpu.memory_space<vmem>>, vector<1x4x66xf32>
    %75 = vector.shape_cast %74 : vector<1x4x66xf32> to vector<4x66xf32>
    %76 = vector.extract_strided_slice %75 {offsets = [0, 0], sizes = [1, 64], strides = [1, 1]} : vector<4x66xf32> to vector<1x64xf32>
    %77 = vector.extract_strided_slice %75 {offsets = [1, 0], sizes = [1, 64], strides = [1, 1]} : vector<4x66xf32> to vector<1x64xf32>
    %78 = vector.extract_strided_slice %75 {offsets = [2, 0], sizes = [1, 66], strides = [1, 1]} : vector<4x66xf32> to vector<1x66xf32>
    %79 = vector.extract_strided_slice %75 {offsets = [3, 0], sizes = [1, 66], strides = [1, 1]} : vector<4x66xf32> to vector<1x66xf32>
    %80 = arith.truncf %79 : vector<1x66xf32> to vector<1x66xbf16>
    %c1_41 = arith.constant 1 : index
    %81 = memref.load %arg0[%c1_41] : memref<5xf32, #tpu.memory_space<smem>>
    %82 = arith.truncf %67 : vector<16x64xf32> to vector<16x64xbf16>
    %cst_42 = arith.constant dense<0.000000e+00> : vector<16x64xf32>
    %83 = tpu.matmul %82, %69, %cst_42 {dimension_numbers = #tpu.dot_dimension_numbers<[1], [0], [0], [1], [0, 0, 1, 1], [], []>} : vector<16x64xbf16>, vector<64x64xbf16>, vector<16x64xf32> -> vector<16x64xf32>
    %84 = vector.broadcast %76 : vector<1x64xf32> to vector<16x64xf32>
    %85 = arith.addf %83, %84 : vector<16x64xf32>
    %cst_43 = arith.constant 0.000000e+00 : f32
    %86 = vector.broadcast %cst_43 : f32 to vector<16x64xf32>
    %87 = arith.maximumf %85, %86 : vector<16x64xf32>
    %88 = arith.truncf %87 : vector<16x64xf32> to vector<16x64xbf16>
    %cst_44 = arith.constant dense<0.000000e+00> : vector<16x64xf32>
    %89 = tpu.matmul %88, %71, %cst_44 {dimension_numbers = #tpu.dot_dimension_numbers<[1], [0], [0], [1], [0, 0, 1, 1], [], []>} : vector<16x64xbf16>, vector<64x64xbf16>, vector<16x64xf32> -> vector<16x64xf32>
    %90 = vector.broadcast %77 : vector<1x64xf32> to vector<16x64xf32>
    %91 = arith.addf %89, %90 : vector<16x64xf32>
    %cst_45 = arith.constant 0.000000e+00 : f32
    %92 = vector.broadcast %cst_45 : f32 to vector<16x64xf32>
    %93 = arith.maximumf %91, %92 : vector<16x64xf32>
    %94 = arith.truncf %93 : vector<16x64xf32> to vector<16x64xbf16>
    %cst_46 = arith.constant dense<0.000000e+00> : vector<16x66xf32>
    %95 = tpu.matmul %94, %73, %cst_46 {dimension_numbers = #tpu.dot_dimension_numbers<[1], [0], [0], [1], [0, 0, 1, 1], [], []>} : vector<16x64xbf16>, vector<64x66xbf16>, vector<16x66xf32> -> vector<16x66xf32>
    %96 = vector.broadcast %78 : vector<1x66xf32> to vector<16x66xf32>
    %97 = arith.addf %95, %96 : vector<16x66xf32>
    %98 = arith.truncf %97 : vector<16x66xf32> to vector<16x66xbf16>
    %99 = vector.extract_strided_slice %97 {offsets = [0, 64], sizes = [16, 1], strides = [1, 1]} : vector<16x66xf32> to vector<16x1xf32>
    %cst_47 = arith.constant dense<0.000000e+00> : vector<1x16xf32>
    %100 = tpu.matmul %80, %98, %cst_47 {dimension_numbers = #tpu.dot_dimension_numbers<[1], [1], [0], [0], [0, 0, 1, 0], [], []>} : vector<1x66xbf16>, vector<16x66xbf16>, vector<1x16xf32> -> vector<1x16xf32>
    %101 = vector.broadcast %99 : vector<16x1xf32> to vector<16x16xf32>
    %102 = vector.broadcast %100 : vector<1x16xf32> to vector<16x16xf32>
    %103 = arith.addf %101, %102 : vector<16x16xf32>
    %104 = arith.extf %1 : vector<16x16xbf16> to vector<16x16xf32>
    %105 = vector.broadcast %81 : f32 to vector<16x16xf32>
    %106 = arith.mulf %104, %105 : vector<16x16xf32>
    %107 = arith.addf %103, %106 : vector<16x16xf32>
    %cst_48 = arith.constant 2.000000e-01 : f32
    %108 = vector.broadcast %cst_48 : f32 to vector<16x16xf32>
    %109 = arith.mulf %108, %107 : vector<16x16xf32>
    %110 = arith.maximumf %107, %109 : vector<16x16xf32>
    %111 = arith.addf %110, %6 : vector<16x16xf32>
    %cst_49 = arith.constant dense<0xFF800000> : vector<16xf32>
    %112 = vector.multi_reduction <maximumf>, %111, %cst_49 [1] : vector<16x16xf32> to vector<16xf32>
    %113 = vector.shape_cast %112 : vector<16xf32> to vector<16x1xf32>
    %cst_50 = arith.constant -1.000000e+29 : f32
    %114 = vector.broadcast %cst_50 : f32 to vector<16x1xf32>
    %115 = arith.maximumf %113, %114 : vector<16x1xf32>
    %116 = vector.broadcast %115 : vector<16x1xf32> to vector<16x16xf32>
    %117 = arith.subf %111, %116 : vector<16x16xf32>
    %118 = math.exp %117 : vector<16x16xf32>
    %119 = arith.truncf %118 : vector<16x16xf32> to vector<16x16xbf16>
    %cst_51 = arith.constant dense<0.000000e+00> : vector<16x66xf32>
    %120 = tpu.matmul %119, %98, %cst_51 {dimension_numbers = #tpu.dot_dimension_numbers<[1], [0], [0], [1], [0, 0, 1, 1], [], []>} : vector<16x16xbf16>, vector<16x66xbf16>, vector<16x66xf32> -> vector<16x66xf32>
    %121 = vector.extract_strided_slice %120 {offsets = [0, 65], sizes = [16, 1], strides = [1, 1]} : vector<16x66xf32> to vector<16x1xf32>
    %cst_52 = arith.constant 1.000000e-16 : f32
    %122 = vector.broadcast %cst_52 : f32 to vector<16x1xf32>
    %123 = arith.maximumf %121, %122 : vector<16x1xf32>
    %124 = vector.extract_strided_slice %120 {offsets = [0, 0], sizes = [16, 64], strides = [1, 1]} : vector<16x66xf32> to vector<16x64xf32>
    %125 = tpu.reciprocal %123 {approx = true} : vector<16x1xf32> -> vector<16x1xf32>
    %126 = vector.broadcast %125 : vector<16x1xf32> to vector<16x64xf32>
    %127 = arith.mulf %124, %126 : vector<16x64xf32>
    %c2 = arith.constant 2 : index
    %c0_53 = arith.constant 0 : index
    %c0_54 = arith.constant 0 : index
    %128 = vector.load %arg5[%c2, %c0_53, %c0_54] : memref<4x64x64xbf16, #tpu.memory_space<vmem>>, vector<1x64x64xbf16>
    %129 = vector.shape_cast %128 : vector<1x64x64xbf16> to vector<64x64xbf16>
    %c2_55 = arith.constant 2 : index
    %c0_56 = arith.constant 0 : index
    %c0_57 = arith.constant 0 : index
    %130 = vector.load %arg6[%c2_55, %c0_56, %c0_57] : memref<4x64x64xbf16, #tpu.memory_space<vmem>>, vector<1x64x64xbf16>
    %131 = vector.shape_cast %130 : vector<1x64x64xbf16> to vector<64x64xbf16>
    %c2_58 = arith.constant 2 : index
    %c0_59 = arith.constant 0 : index
    %c0_60 = arith.constant 0 : index
    %132 = vector.load %arg7[%c2_58, %c0_59, %c0_60] : memref<4x64x66xbf16, #tpu.memory_space<vmem>>, vector<1x64x66xbf16>
    %133 = vector.shape_cast %132 : vector<1x64x66xbf16> to vector<64x66xbf16>
    %c2_61 = arith.constant 2 : index
    %c0_62 = arith.constant 0 : index
    %c0_63 = arith.constant 0 : index
    %134 = vector.load %arg8[%c2_61, %c0_62, %c0_63] : memref<4x4x66xf32, #tpu.memory_space<vmem>>, vector<1x4x66xf32>
    %135 = vector.shape_cast %134 : vector<1x4x66xf32> to vector<4x66xf32>
    %136 = vector.extract_strided_slice %135 {offsets = [0, 0], sizes = [1, 64], strides = [1, 1]} : vector<4x66xf32> to vector<1x64xf32>
    %137 = vector.extract_strided_slice %135 {offsets = [1, 0], sizes = [1, 64], strides = [1, 1]} : vector<4x66xf32> to vector<1x64xf32>
    %138 = vector.extract_strided_slice %135 {offsets = [2, 0], sizes = [1, 66], strides = [1, 1]} : vector<4x66xf32> to vector<1x66xf32>
    %139 = vector.extract_strided_slice %135 {offsets = [3, 0], sizes = [1, 66], strides = [1, 1]} : vector<4x66xf32> to vector<1x66xf32>
    %140 = arith.truncf %139 : vector<1x66xf32> to vector<1x66xbf16>
    %c2_64 = arith.constant 2 : index
    %141 = memref.load %arg0[%c2_64] : memref<5xf32, #tpu.memory_space<smem>>
    %142 = arith.truncf %127 : vector<16x64xf32> to vector<16x64xbf16>
    %cst_65 = arith.constant dense<0.000000e+00> : vector<16x64xf32>
    %143 = tpu.matmul %142, %129, %cst_65 {dimension_numbers = #tpu.dot_dimension_numbers<[1], [0], [0], [1], [0, 0, 1, 1], [], []>} : vector<16x64xbf16>, vector<64x64xbf16>, vector<16x64xf32> -> vector<16x64xf32>
    %144 = vector.broadcast %136 : vector<1x64xf32> to vector<16x64xf32>
    %145 = arith.addf %143, %144 : vector<16x64xf32>
    %cst_66 = arith.constant 0.000000e+00 : f32
    %146 = vector.broadcast %cst_66 : f32 to vector<16x64xf32>
    %147 = arith.maximumf %145, %146 : vector<16x64xf32>
    %148 = arith.truncf %147 : vector<16x64xf32> to vector<16x64xbf16>
    %cst_67 = arith.constant dense<0.000000e+00> : vector<16x64xf32>
    %149 = tpu.matmul %148, %131, %cst_67 {dimension_numbers = #tpu.dot_dimension_numbers<[1], [0], [0], [1], [0, 0, 1, 1], [], []>} : vector<16x64xbf16>, vector<64x64xbf16>, vector<16x64xf32> -> vector<16x64xf32>
    %150 = vector.broadcast %137 : vector<1x64xf32> to vector<16x64xf32>
    %151 = arith.addf %149, %150 : vector<16x64xf32>
    %cst_68 = arith.constant 0.000000e+00 : f32
    %152 = vector.broadcast %cst_68 : f32 to vector<16x64xf32>
    %153 = arith.maximumf %151, %152 : vector<16x64xf32>
    %154 = arith.truncf %153 : vector<16x64xf32> to vector<16x64xbf16>
    %cst_69 = arith.constant dense<0.000000e+00> : vector<16x66xf32>
    %155 = tpu.matmul %154, %133, %cst_69 {dimension_numbers = #tpu.dot_dimension_numbers<[1], [0], [0], [1], [0, 0, 1, 1], [], []>} : vector<16x64xbf16>, vector<64x66xbf16>, vector<16x66xf32> -> vector<16x66xf32>
    %156 = vector.broadcast %138 : vector<1x66xf32> to vector<16x66xf32>
    %157 = arith.addf %155, %156 : vector<16x66xf32>
    %158 = arith.truncf %157 : vector<16x66xf32> to vector<16x66xbf16>
    %159 = vector.extract_strided_slice %157 {offsets = [0, 64], sizes = [16, 1], strides = [1, 1]} : vector<16x66xf32> to vector<16x1xf32>
    %cst_70 = arith.constant dense<0.000000e+00> : vector<1x16xf32>
    %160 = tpu.matmul %140, %158, %cst_70 {dimension_numbers = #tpu.dot_dimension_numbers<[1], [1], [0], [0], [0, 0, 1, 0], [], []>} : vector<1x66xbf16>, vector<16x66xbf16>, vector<1x16xf32> -> vector<1x16xf32>
    %161 = vector.broadcast %159 : vector<16x1xf32> to vector<16x16xf32>
    %162 = vector.broadcast %160 : vector<1x16xf32> to vector<16x16xf32>
    %163 = arith.addf %161, %162 : vector<16x16xf32>
    %164 = arith.extf %1 : vector<16x16xbf16> to vector<16x16xf32>
    %165 = vector.broadcast %141 : f32 to vector<16x16xf32>
    %166 = arith.mulf %164, %165 : vector<16x16xf32>
    %167 = arith.addf %163, %166 : vector<16x16xf32>
    %cst_71 = arith.constant 2.000000e-01 : f32
    %168 = vector.broadcast %cst_71 : f32 to vector<16x16xf32>
    %169 = arith.mulf %168, %167 : vector<16x16xf32>
    %170 = arith.maximumf %167, %169 : vector<16x16xf32>
    %171 = arith.addf %170, %6 : vector<16x16xf32>
    %cst_72 = arith.constant dense<0xFF800000> : vector<16xf32>
    %172 = vector.multi_reduction <maximumf>, %171, %cst_72 [1] : vector<16x16xf32> to vector<16xf32>
    %173 = vector.shape_cast %172 : vector<16xf32> to vector<16x1xf32>
    %cst_73 = arith.constant -1.000000e+29 : f32
    %174 = vector.broadcast %cst_73 : f32 to vector<16x1xf32>
    %175 = arith.maximumf %173, %174 : vector<16x1xf32>
    %176 = vector.broadcast %175 : vector<16x1xf32> to vector<16x16xf32>
    %177 = arith.subf %171, %176 : vector<16x16xf32>
    %178 = math.exp %177 : vector<16x16xf32>
    %179 = arith.truncf %178 : vector<16x16xf32> to vector<16x16xbf16>
    %cst_74 = arith.constant dense<0.000000e+00> : vector<16x66xf32>
    %180 = tpu.matmul %179, %158, %cst_74 {dimension_numbers = #tpu.dot_dimension_numbers<[1], [0], [0], [1], [0, 0, 1, 1], [], []>} : vector<16x16xbf16>, vector<16x66xbf16>, vector<16x66xf32> -> vector<16x66xf32>
    %181 = vector.extract_strided_slice %180 {offsets = [0, 65], sizes = [16, 1], strides = [1, 1]} : vector<16x66xf32> to vector<16x1xf32>
    %cst_75 = arith.constant 1.000000e-16 : f32
    %182 = vector.broadcast %cst_75 : f32 to vector<16x1xf32>
    %183 = arith.maximumf %181, %182 : vector<16x1xf32>
    %184 = vector.extract_strided_slice %180 {offsets = [0, 0], sizes = [16, 64], strides = [1, 1]} : vector<16x66xf32> to vector<16x64xf32>
    %185 = tpu.reciprocal %183 {approx = true} : vector<16x1xf32> -> vector<16x1xf32>
    %186 = vector.broadcast %185 : vector<16x1xf32> to vector<16x64xf32>
    %187 = arith.mulf %184, %186 : vector<16x64xf32>
    %c3 = arith.constant 3 : index
    %c0_76 = arith.constant 0 : index
    %c0_77 = arith.constant 0 : index
    %188 = vector.load %arg5[%c3, %c0_76, %c0_77] : memref<4x64x64xbf16, #tpu.memory_space<vmem>>, vector<1x64x64xbf16>
    %189 = vector.shape_cast %188 : vector<1x64x64xbf16> to vector<64x64xbf16>
    %c3_78 = arith.constant 3 : index
    %c0_79 = arith.constant 0 : index
    %c0_80 = arith.constant 0 : index
    %190 = vector.load %arg6[%c3_78, %c0_79, %c0_80] : memref<4x64x64xbf16, #tpu.memory_space<vmem>>, vector<1x64x64xbf16>
    %191 = vector.shape_cast %190 : vector<1x64x64xbf16> to vector<64x64xbf16>
    %c3_81 = arith.constant 3 : index
    %c0_82 = arith.constant 0 : index
    %c0_83 = arith.constant 0 : index
    %192 = vector.load %arg7[%c3_81, %c0_82, %c0_83] : memref<4x64x66xbf16, #tpu.memory_space<vmem>>, vector<1x64x66xbf16>
    %193 = vector.shape_cast %192 : vector<1x64x66xbf16> to vector<64x66xbf16>
    %c3_84 = arith.constant 3 : index
    %c0_85 = arith.constant 0 : index
    %c0_86 = arith.constant 0 : index
    %194 = vector.load %arg8[%c3_84, %c0_85, %c0_86] : memref<4x4x66xf32, #tpu.memory_space<vmem>>, vector<1x4x66xf32>
    %195 = vector.shape_cast %194 : vector<1x4x66xf32> to vector<4x66xf32>
    %196 = vector.extract_strided_slice %195 {offsets = [0, 0], sizes = [1, 64], strides = [1, 1]} : vector<4x66xf32> to vector<1x64xf32>
    %197 = vector.extract_strided_slice %195 {offsets = [1, 0], sizes = [1, 64], strides = [1, 1]} : vector<4x66xf32> to vector<1x64xf32>
    %198 = vector.extract_strided_slice %195 {offsets = [2, 0], sizes = [1, 66], strides = [1, 1]} : vector<4x66xf32> to vector<1x66xf32>
    %199 = vector.extract_strided_slice %195 {offsets = [3, 0], sizes = [1, 66], strides = [1, 1]} : vector<4x66xf32> to vector<1x66xf32>
    %200 = arith.truncf %199 : vector<1x66xf32> to vector<1x66xbf16>
    %c3_87 = arith.constant 3 : index
    %201 = memref.load %arg0[%c3_87] : memref<5xf32, #tpu.memory_space<smem>>
    %202 = arith.truncf %187 : vector<16x64xf32> to vector<16x64xbf16>
    %cst_88 = arith.constant dense<0.000000e+00> : vector<16x64xf32>
    %203 = tpu.matmul %202, %189, %cst_88 {dimension_numbers = #tpu.dot_dimension_numbers<[1], [0], [0], [1], [0, 0, 1, 1], [], []>} : vector<16x64xbf16>, vector<64x64xbf16>, vector<16x64xf32> -> vector<16x64xf32>
    %204 = vector.broadcast %196 : vector<1x64xf32> to vector<16x64xf32>
    %205 = arith.addf %203, %204 : vector<16x64xf32>
    %cst_89 = arith.constant 0.000000e+00 : f32
    %206 = vector.broadcast %cst_89 : f32 to vector<16x64xf32>
    %207 = arith.maximumf %205, %206 : vector<16x64xf32>
    %208 = arith.truncf %207 : vector<16x64xf32> to vector<16x64xbf16>
    %cst_90 = arith.constant dense<0.000000e+00> : vector<16x64xf32>
    %209 = tpu.matmul %208, %191, %cst_90 {dimension_numbers = #tpu.dot_dimension_numbers<[1], [0], [0], [1], [0, 0, 1, 1], [], []>} : vector<16x64xbf16>, vector<64x64xbf16>, vector<16x64xf32> -> vector<16x64xf32>
    %210 = vector.broadcast %197 : vector<1x64xf32> to vector<16x64xf32>
    %211 = arith.addf %209, %210 : vector<16x64xf32>
    %cst_91 = arith.constant 0.000000e+00 : f32
    %212 = vector.broadcast %cst_91 : f32 to vector<16x64xf32>
    %213 = arith.maximumf %211, %212 : vector<16x64xf32>
    %214 = arith.truncf %213 : vector<16x64xf32> to vector<16x64xbf16>
    %cst_92 = arith.constant dense<0.000000e+00> : vector<16x66xf32>
    %215 = tpu.matmul %214, %193, %cst_92 {dimension_numbers = #tpu.dot_dimension_numbers<[1], [0], [0], [1], [0, 0, 1, 1], [], []>} : vector<16x64xbf16>, vector<64x66xbf16>, vector<16x66xf32> -> vector<16x66xf32>
    %216 = vector.broadcast %198 : vector<1x66xf32> to vector<16x66xf32>
    %217 = arith.addf %215, %216 : vector<16x66xf32>
    %218 = arith.truncf %217 : vector<16x66xf32> to vector<16x66xbf16>
    %219 = vector.extract_strided_slice %217 {offsets = [0, 64], sizes = [16, 1], strides = [1, 1]} : vector<16x66xf32> to vector<16x1xf32>
    %cst_93 = arith.constant dense<0.000000e+00> : vector<1x16xf32>
    %220 = tpu.matmul %200, %218, %cst_93 {dimension_numbers = #tpu.dot_dimension_numbers<[1], [1], [0], [0], [0, 0, 1, 0], [], []>} : vector<1x66xbf16>, vector<16x66xbf16>, vector<1x16xf32> -> vector<1x16xf32>
    %221 = vector.broadcast %219 : vector<16x1xf32> to vector<16x16xf32>
    %222 = vector.broadcast %220 : vector<1x16xf32> to vector<16x16xf32>
    %223 = arith.addf %221, %222 : vector<16x16xf32>
    %224 = arith.extf %1 : vector<16x16xbf16> to vector<16x16xf32>
    %225 = vector.broadcast %201 : f32 to vector<16x16xf32>
    %226 = arith.mulf %224, %225 : vector<16x16xf32>
    %227 = arith.addf %223, %226 : vector<16x16xf32>
    %cst_94 = arith.constant 2.000000e-01 : f32
    %228 = vector.broadcast %cst_94 : f32 to vector<16x16xf32>
    %229 = arith.mulf %228, %227 : vector<16x16xf32>
    %230 = arith.maximumf %227, %229 : vector<16x16xf32>
    %231 = arith.addf %230, %6 : vector<16x16xf32>
    %cst_95 = arith.constant dense<0xFF800000> : vector<16xf32>
    %232 = vector.multi_reduction <maximumf>, %231, %cst_95 [1] : vector<16x16xf32> to vector<16xf32>
    %233 = vector.shape_cast %232 : vector<16xf32> to vector<16x1xf32>
    %cst_96 = arith.constant -1.000000e+29 : f32
    %234 = vector.broadcast %cst_96 : f32 to vector<16x1xf32>
    %235 = arith.maximumf %233, %234 : vector<16x1xf32>
    %236 = vector.broadcast %235 : vector<16x1xf32> to vector<16x16xf32>
    %237 = arith.subf %231, %236 : vector<16x16xf32>
    %238 = math.exp %237 : vector<16x16xf32>
    %239 = arith.truncf %238 : vector<16x16xf32> to vector<16x16xbf16>
    %cst_97 = arith.constant dense<0.000000e+00> : vector<16x66xf32>
    %240 = tpu.matmul %239, %218, %cst_97 {dimension_numbers = #tpu.dot_dimension_numbers<[1], [0], [0], [1], [0, 0, 1, 1], [], []>} : vector<16x16xbf16>, vector<16x66xbf16>, vector<16x66xf32> -> vector<16x66xf32>
    %241 = vector.extract_strided_slice %240 {offsets = [0, 65], sizes = [16, 1], strides = [1, 1]} : vector<16x66xf32> to vector<16x1xf32>
    %cst_98 = arith.constant 1.000000e-16 : f32
    %242 = vector.broadcast %cst_98 : f32 to vector<16x1xf32>
    %243 = arith.maximumf %241, %242 : vector<16x1xf32>
    %244 = vector.extract_strided_slice %240 {offsets = [0, 0], sizes = [16, 64], strides = [1, 1]} : vector<16x66xf32> to vector<16x64xf32>
    %245 = tpu.reciprocal %243 {approx = true} : vector<16x1xf32> -> vector<16x1xf32>
    %246 = vector.broadcast %245 : vector<16x1xf32> to vector<16x64xf32>
    %247 = arith.mulf %244, %246 : vector<16x64xf32>
    %c0_99 = arith.constant 0 : index
    %c0_100 = arith.constant 0 : index
    %248 = vector.load %arg4[%c0_99, %c0_100] : memref<2x16xf32, #tpu.memory_space<vmem>>, vector<2x16xf32>
    %c0_101 = arith.constant 0 : index
    %c0_102 = arith.constant 0 : index
    %249 = vector.load %arg10[%c0_101, %c0_102] : memref<2x128xf32, #tpu.memory_space<vmem>>, vector<2x128xf32>
    %250 = vector.extract_strided_slice %249 {offsets = [0, 0], sizes = [1, 128], strides = [1, 1]} : vector<2x128xf32> to vector<1x128xf32>
    %251 = vector.extract_strided_slice %249 {offsets = [1, 0], sizes = [1, 128], strides = [1, 1]} : vector<2x128xf32> to vector<1x128xf32>
    %c4 = arith.constant 4 : index
    %252 = memref.load %arg0[%c4] : memref<5xf32, #tpu.memory_space<smem>>
    %253 = arith.truncf %247 : vector<16x64xf32> to vector<16x64xbf16>
    %c0_103 = arith.constant 0 : index
    %c0_104 = arith.constant 0 : index
    %254 = vector.load %arg9[%c0_103, %c0_104] : memref<64x128xbf16, #tpu.memory_space<vmem>>, vector<64x128xbf16>
    %cst_105 = arith.constant dense<0.000000e+00> : vector<16x128xf32>
    %255 = tpu.matmul %253, %254, %cst_105 {dimension_numbers = #tpu.dot_dimension_numbers<[1], [0], [0], [1], [0, 0, 1, 1], [], []>} : vector<16x64xbf16>, vector<64x128xbf16>, vector<16x128xf32> -> vector<16x128xf32>
    %256 = vector.broadcast %250 : vector<1x128xf32> to vector<16x128xf32>
    %257 = arith.addf %255, %256 : vector<16x128xf32>
    %258 = math.tanh %257 : vector<16x128xf32>
    %cst_106 = arith.constant dense<0.000000e+00> : vector<1x16xf32>
    %259 = tpu.matmul %251, %258, %cst_106 {dimension_numbers = #tpu.dot_dimension_numbers<[1], [1], [0], [0], [0, 0, 1, 0], [], []>} : vector<1x128xf32>, vector<16x128xf32>, vector<1x16xf32> -> vector<1x16xf32>
    %260 = vector.broadcast %252 : f32 to vector<1x16xf32>
    %261 = arith.addf %259, %260 : vector<1x16xf32>
    %cst_107 = arith.constant 0.000000e+00 : f32
    %262 = vector.broadcast %cst_107 : f32 to vector<2x16xf32>
    %263 = arith.cmpf ogt, %248, %262 : vector<2x16xf32>
    %cst_108 = arith.constant -1.000000e+30 : f32
    %264 = vector.shape_cast %261 : vector<1x16xf32> to vector<1x16xf32>
    %265 = vector.broadcast %264 : vector<1x16xf32> to vector<2x16xf32>
    %266 = vector.broadcast %cst_108 : f32 to vector<2x16xf32>
    %267 = arith.select %263, %265, %266 : vector<2x16xi1>, vector<2x16xf32>
    %cst_109 = arith.constant dense<0xFF800000> : vector<2xf32>
    %268 = vector.multi_reduction <maximumf>, %267, %cst_109 [1] : vector<2x16xf32> to vector<2xf32>
    %269 = vector.shape_cast %268 : vector<2xf32> to vector<2x1xf32>
    %cst_110 = arith.constant dense<0.000000e+00> : vector<1x16xf32>
    %270 = tpu.matmul %269, %248, %cst_110 {dimension_numbers = #tpu.dot_dimension_numbers<[0], [0], [1], [1], [0, 1, 1, 1], [], []>} : vector<2x1xf32>, vector<2x16xf32>, vector<1x16xf32> -> vector<1x16xf32>
    %271 = arith.subf %261, %270 : vector<1x16xf32>
    %272 = math.exp %271 : vector<1x16xf32>
    %cst_111 = arith.constant dense<0.000000e+00> : vector<2x1xf32>
    %273 = tpu.matmul %248, %272, %cst_111 {dimension_numbers = #tpu.dot_dimension_numbers<[1], [1], [0], [0], [0, 0, 1, 0], [], []>} : vector<2x16xf32>, vector<1x16xf32>, vector<2x1xf32> -> vector<2x1xf32>
    %cst_112 = arith.constant dense<0.000000e+00> : vector<1x16xf32>
    %274 = tpu.matmul %273, %248, %cst_112 {dimension_numbers = #tpu.dot_dimension_numbers<[0], [0], [1], [1], [0, 1, 1, 1], [], []>} : vector<2x1xf32>, vector<2x16xf32>, vector<1x16xf32> -> vector<1x16xf32>
    %cst_113 = arith.constant 1.000000e-16 : f32
    %275 = vector.broadcast %cst_113 : f32 to vector<1x16xf32>
    %276 = arith.maximumf %274, %275 : vector<1x16xf32>
    %277 = arith.divf %272, %276 : vector<1x16xf32>
    %c0_114 = arith.constant 0 : index
    %c0_115 = arith.constant 0 : index
    %278 = vector.load %arg14[%c0_114, %c0_115] : memref<1x16xf32, #tpu.memory_space<vmem>>, vector<1x16xf32>
    tpu.vector_store %arg14[%c0_114, %c0_115], %277 {strides = array<i32>} : memref<1x16xf32, #tpu.memory_space<vmem>>, vector<1x16xf32>,
    %279 = vector.broadcast %277 : vector<1x16xf32> to vector<2x16xf32>
    %280 = arith.mulf %248, %279 : vector<2x16xf32>
    %cst_116 = arith.constant dense<0.000000e+00> : vector<2x64xf32>
    %281 = tpu.matmul %280, %247, %cst_116 {dimension_numbers = #tpu.dot_dimension_numbers<[1], [0], [0], [1], [0, 0, 1, 1], [], []>} : vector<2x16xf32>, vector<16x64xf32>, vector<2x64xf32> -> vector<2x64xf32>
    %c0_117 = arith.constant 0 : index
    %c0_118 = arith.constant 0 : index
    %282 = vector.load %arg11[%c0_117, %c0_118] : memref<64x1xf32, #tpu.memory_space<vmem>>, vector<64x1xf32>
    %cst_119 = arith.constant dense<0.000000e+00> : vector<2x1xf32>
    %283 = tpu.matmul %281, %282, %cst_119 {dimension_numbers = #tpu.dot_dimension_numbers<[1], [0], [0], [1], [0, 0, 1, 1], [], []>} : vector<2x64xf32>, vector<64x1xf32>, vector<2x1xf32> -> vector<2x1xf32>
    %c0_120 = arith.constant 0 : index
    %c0_121 = arith.constant 0 : index
    %284 = vector.load %arg12[%c0_120, %c0_121] : memref<1x1xf32, #tpu.memory_space<vmem>>, vector<1x1xf32>
    %285 = vector.broadcast %284 : vector<1x1xf32> to vector<2x1xf32>
    %286 = arith.addf %283, %285 : vector<2x1xf32>
    %cst_122 = arith.constant 0.000000e+00 : f32
    %287 = vector.broadcast %cst_122 : f32 to vector<2x1xf32>
    %288 = arith.subf %287, %286 : vector<2x1xf32>
    %289 = math.exp %288 : vector<2x1xf32>
    %cst_123 = arith.constant 1.000000e+00 : f32
    %290 = vector.broadcast %cst_123 : f32 to vector<2x1xf32>
    %291 = arith.addf %290, %289 : vector<2x1xf32>
    %cst_124 = arith.constant 1.000000e+00 : f32
    %292 = vector.broadcast %cst_124 : f32 to vector<2x1xf32>
    %293 = arith.divf %292, %291 : vector<2x1xf32>
    %c0_125 = arith.constant 0 : index
    %c0_126 = arith.constant 0 : index
    %294 = vector.load %arg13[%c0_125, %c0_126] : memref<2x1xf32, #tpu.memory_space<vmem>>, vector<2x1xf32>
    tpu.vector_store %arg13[%c0_125, %c0_126], %293 {strides = array<i32>} : memref<2x1xf32, #tpu.memory_space<vmem>>, vector<2x1xf32>,
    return
  }
}

</mosaic_0001>

<llo_original>
// kernel: graph_att_surv_forward.1
$region0: #{graph_att_surv_forward.1}
  #allocation0 [shape = 'u32[]', space=smem, size = 0x4, offset = 0x4, fixed_abs, tag = 'smem constant byte address 0x4 - core index']
  #allocation1 [shape = 'u32[144,128]{1,0:T(1,128)}', space=vmem, size = 0x12000, scoped, tag = 'internal scratch']
  #allocation2 [shape = 'f32[1,1]{1,0:T(1,128)S(1)}', space=vmem, size = 0x200, scoped, tag = 'scoped memory for graph_att_surv_forward.1']
  %s0 = inlined_call_operand.vmem [shape: f32[5], index: 0, kind: input, shape index: {}]
  %s1 = inlined_call_operand.vmem [shape: f32[16,64], index: 1, kind: input, shape index: {}]
  %s2 = inlined_call_operand.vmem [shape: bf16[16,16], index: 2, kind: input, shape index: {}]
  %s3 = inlined_call_operand.vmem [shape: bf16[16,16], index: 3, kind: input, shape index: {}]
  %s4 = inlined_call_operand.vmem [shape: f32[2,16], index: 4, kind: input, shape index: {}]
  %s5 = inlined_call_operand.vmem [shape: bf16[4,64,64], index: 5, kind: input, shape index: {}]
  %s6 = inlined_call_operand.vmem [shape: bf16[4,64,64], index: 6, kind: input, shape index: {}]
  %s7 = inlined_call_operand.vmem [shape: bf16[4,64,66], index: 7, kind: input, shape index: {}]
  %s8 = inlined_call_operand.vmem [shape: f32[4,4,66], index: 8, kind: input, shape index: {}]
  %s9 = inlined_call_operand.vmem [shape: bf16[64,128], index: 9, kind: input, shape index: {}]
  %s10 = inlined_call_operand.vmem [shape: f32[2,128], index: 10, kind: input, shape index: {}]
  %s11 = inlined_call_operand.vmem [shape: f32[64,1], index: 11, kind: input, shape index: {}]
  %s12 = inlined_call_operand.<no memory space> [shape: f32[1,1], index: 12, kind: input, shape index: {}]
  %s13 = inlined_call_operand.vmem [shape: f32[2,1], index: 13, kind: output, shape index: {0}]
  %s14 = inlined_call_operand.hbm [shape: f32[1,16], index: 14, kind: output, shape index: {1}]
  %15 = xla_tuple %s13, %s14
  %s16 = sld [smem:[#allocation0]]
  $region74: #{graph_att_surv_forward.1} parent=0
    _
  %s18 = ssub.s32 1, %s16
  %s19 = scalar_select 0, %s18, %s16
  %v20 = vstv %s12
  %21 = vst [vmem:[#allocation2] sm:$0x1] %v20
  $region1: #{graph_att_surv_forward.1} parent=0
    #allocation3 [shape = 'u8[512]{0}', space=smem, size = 0x200, scoped, tag = 'input window, operand 0, single buffered']
    #allocation4 [shape = 's32[1]{0}', space=sflag, size = 0x4, scoped, tag = 'scoped memory for graph_att_surv_forward.1']
    #allocation5 [shape = 's32[1]{0}', space=sflag, size = 0x4, scoped, tag = 'scoped memory for graph_att_surv_forward.1']
    #allocation6 [shape = 'u8[512]{0}', space=vmem, size = 0x400, scoped, tag = 'output window, operand 1, single buffered']
    %22 = vsyncpa [#allocation5], 0
    %23 = vsyncpa [#allocation4], 0
    // Predicated region
    $region2: #{graph_att_surv_forward.1} parent=1 // pred_check
      _
    $region3: #{graph_att_surv_forward.1} parent=1 // pred_check_branch
      %25 = sbr.rel (0) target = $region5
    $region4: #{graph_att_surv_forward.1} parent=1 // pred_region
      %s27 = ssub.s32 16, 16
      %28 = vsyncadd [#allocation5], %s27
      %s30 = sshll.u32 %s0, 4
      %s31 = int_to_ptr.vmem [resolvable:$true] %s30
      %33 = dma.vmem_to_smem %s31, 16, [#allocation3], [#allocation5]
    $region5: #{graph_att_surv_forward.1} parent=1 // pred_fallthru
      _
    // Predicated region
    $region6: #{graph_att_surv_forward.1} parent=1 // pred_check
      _
    $region7: #{graph_att_surv_forward.1} parent=1 // pred_check_branch
      %35 = sbr.rel (0) target = $region9
    $region8: #{graph_att_surv_forward.1} parent=1 // pred_region
      _
    $region9: #{graph_att_surv_forward.1} parent=1 // pred_fallthru
      _
    // Predicated region
    $region10: #{graph_att_surv_forward.1} parent=1 // pred_check
      _
    $region11: #{graph_att_surv_forward.1} parent=1 // pred_check_branch
      %37 = sbr.rel (0) target = $region13
    $region12: #{graph_att_surv_forward.1} parent=1 // pred_region
      _
    $region13: #{graph_att_surv_forward.1} parent=1 // pred_fallthru
      _
    // Predicated region
    $region14: #{graph_att_surv_forward.1} parent=1 // pred_check
      _
    $region15: #{graph_att_surv_forward.1} parent=1 // pred_check_branch
      %39 = sbr.rel (0) target = $region17
    $region16: #{graph_att_surv_forward.1} parent=1 // pred_region
      _
    $region17: #{graph_att_surv_forward.1} parent=1 // pred_fallthru
      _
    // Predicated region
    $region18: #{graph_att_surv_forward.1} parent=1 // pred_check
      _
    $region19: #{graph_att_surv_forward.1} parent=1 // pred_check_branch
      %41 = sbr.rel (0) target = $region21
    $region20: #{graph_att_surv_forward.1} parent=1 // pred_region
      _
    $region21: #{graph_att_surv_forward.1} parent=1 // pred_fallthru
      _
    // Predicated region
    $region22: #{graph_att_surv_forward.1} parent=1 // pred_check
      _
    $region23: #{graph_att_surv_forward.1} parent=1 // pred_check_branch
      %43 = sbr.rel (0) target = $region25
    $region24: #{graph_att_surv_forward.1} parent=1 // pred_region
      _
    $region25: #{graph_att_surv_forward.1} parent=1 // pred_fallthru
      _
    // Predicated region
    $region26: #{graph_att_surv_forward.1} parent=1 // pred_check
      _
    $region27: #{graph_att_surv_forward.1} parent=1 // pred_check_branch
      %45 = sbr.rel (0) target = $region29
    $region28: #{graph_att_surv_forward.1} parent=1 // pred_region
      _
    $region29: #{graph_att_surv_forward.1} parent=1 // pred_fallthru
      _
    // Predicated region
    $region30: #{graph_att_surv_forward.1} parent=1 // pred_check
      _
    $region31: #{graph_att_surv_forward.1} parent=1 // pred_check_branch
      %47 = sbr.rel (0) target = $region33
    $region32: #{graph_att_surv_forward.1} parent=1 // pred_region
      _
    $region33: #{graph_att_surv_forward.1} parent=1 // pred_fallthru
      _
    // Predicated region
    $region34: #{graph_att_surv_forward.1} parent=1 // pred_check
      _
    $region35: #{graph_att_surv_forward.1} parent=1 // pred_check_branch
      %49 = sbr.rel (0) target = $region37
    $region36: #{graph_att_surv_forward.1} parent=1 // pred_region
      _
    $region37: #{graph_att_surv_forward.1} parent=1 // pred_fallthru
      _
    // Predicated region
    $region38: #{graph_att_surv_forward.1} parent=1 // pred_check
      _
    $region39: #{graph_att_surv_forward.1} parent=1 // pred_check_branch
      %51 = sbr.rel (0) target = $region41
    $region40: #{graph_att_surv_forward.1} parent=1 // pred_region
      _
    $region41: #{graph_att_surv_forward.1} parent=1 // pred_fallthru
      _
    // Predicated region
    $region42: #{graph_att_surv_forward.1} parent=1 // pred_check
      _
    $region43: #{graph_att_surv_forward.1} parent=1 // pred_check_branch
      %53 = sbr.rel (0) target = $region45
    $region44: #{graph_att_surv_forward.1} parent=1 // pred_region
      _
    $region45: #{graph_att_surv_forward.1} parent=1 // pred_fallthru
      _
    // Predicated region
    $region46: #{graph_att_surv_forward.1} parent=1 // pred_check
      _
    $region47: #{graph_att_surv_forward.1} parent=1 // pred_check_branch
      %55 = sbr.rel (0) target = $region49
    $region48: #{graph_att_surv_forward.1} parent=1 // pred_region
      _
    $region49: #{graph_att_surv_forward.1} parent=1 // pred_fallthru
      _
    // Predicated region
    $region50: #{graph_att_surv_forward.1} parent=1 // pred_check
      _
    $region51: #{graph_att_surv_forward.1} parent=1 // pred_check_branch
      %57 = sbr.rel (0) target = $region53
    $region52: #{graph_att_surv_forward.1} parent=1 // pred_region
      _
    $region53: #{graph_att_surv_forward.1} parent=1 // pred_fallthru
      _
    // Predicated region
    $region54: #{graph_att_surv_forward.1} parent=1 // pred_check
      _
    $region55: #{graph_att_surv_forward.1} parent=1 // pred_check_branch
      %59 = sbr.rel (0) target = $region57
    $region56: #{graph_att_surv_forward.1} parent=1 // pred_region
      %60 = dma.done [#allocation5], 16
    $region57: #{graph_att_surv_forward.1} parent=1 // pred_fallthru
      _
    %61 = sfence
    %v63 = vld [vmem:[%s2] sm:$0xf]
    %v64 = vld [vmem:[%s2 + $0x4] sm:$0xf]
    %v65 = vld [vmem:[%s3] sm:$0xf]
    %v66 = vld [vmem:[%s3 + $0x4] sm:$0xf]
    %v67 = vunpack.c.l.bf16 %v63
    %v68 = vunpack.c.l.bf16 %v64
    %v69 = vsub.f32 %v67, 1.0
    %v70 = vsub.f32 %v68, 1.0
    %v71 = vmul.f32 %v69, 1e+30
    %v72 = vmul.f32 %v70, 1e+30
    %v73 = vld [vmem:[%s1] sm:$0xff]
    %v74 = vld [vmem:[%s1 + $0x8] sm:$0xff]
    %v75 = vld [vmem:[%s5] sm:$0xf]
    %v76 = vld [vmem:[%s5 + $0x4] sm:$0xf]
    %v77 = vld [vmem:[%s5 + $0x8] sm:$0xf]
    %v78 = vld [vmem:[%s5 + $0xc] sm:$0xf]
    %v79 = vld [vmem:[%s5 + $0x10] sm:$0xf]
    %v80 = vld [vmem:[%s5 + $0x14] sm:$0xf]
    %v81 = vld [vmem:[%s5 + $0x18] sm:$0xf]
    %v82 = vld [vmem:[%s5 + $0x1c] sm:$0xf]
    %v83 = vld [vmem:[%s6] sm:$0xf]
    %v84 = vld [vmem:[%s6 + $0x4] sm:$0xf]
    %v85 = vld [vmem:[%s6 + $0x8] sm:$0xf]
    %v86 = vld [vmem:[%s6 + $0xc] sm:$0xf]
    %v87 = vld [vmem:[%s6 + $0x10] sm:$0xf]
    %v88 = vld [vmem:[%s6 + $0x14] sm:$0xf]
    %v89 = vld [vmem:[%s6 + $0x18] sm:$0xf]
    %v90 = vld [vmem:[%s6 + $0x1c] sm:$0xf]
    %v91 = vld [vmem:[%s7] sm:$0xf]
    %v92 = vld [vmem:[%s7 + $0x4] sm:$0xf]
    %v93 = vld [vmem:[%s7 + $0x8] sm:$0xf]
    %v94 = vld [vmem:[%s7 + $0xc] sm:$0xf]
    %v95 = vld [vmem:[%s7 + $0x10] sm:$0xf]
    %v96 = vld [vmem:[%s7 + $0x14] sm:$0xf]
    %v97 = vld [vmem:[%s7 + $0x18] sm:$0xf]
    %v98 = vld [vmem:[%s7 + $0x1c] sm:$0xf]
    %v99 = vld [vmem:[%s8] sm:$0xf]
    %v100 = vpack.c.bf16 %v99, %v99
    %s101 = sld [smem:[#allocation3]]
    %v102 = vpack.c.bf16 %v74, %v73
    %v103 = vlaneseq
    %v104 = vshrl.u32 %v103, 7
    %v105 = vsub.s32 0, %v104
    %v106 = vrot.slane %v99, %v105
    %v115 = vunpack.c.l.b16 %v75
    %v116 = vunpack.c.l.b16 %v76
    %v117 = vunpack.c.l.b16 %v77
    %v118 = vunpack.c.l.b16 %v78
    %v119 = vunpack.c.l.b16 %v79
    %v120 = vunpack.c.l.b16 %v80
    %v121 = vunpack.c.l.b16 %v81
    %v122 = vunpack.c.l.b16 %v82
    %v123 = vpack.c.b16 %v116, %v115
    %v124 = vpack.c.b16 %v118, %v117
    %v125 = vpack.c.b16 %v120, %v119
    %v126 = vpack.c.b16 %v122, %v121
    %vm131 = vcmask 523264
    %v133 = vsel %vm131, %v102, 0
    %135 = vmatprep.subr.bf16.mxu0 0
    %136 = vmatpush1.bf16.msra.mxu0 %v123
    %137 = vmatprep.subr.bf16.mxu0 0
    %138 = vmatpush1.bf16.msra.mxu0 %v124
    %139 = vmatprep.subr.bf16.mxu0 0
    %140 = vmatpush1.bf16.msra.mxu0 %v125
    %141 = vmatprep.subr.bf16.mxu0 0
    %142 = vmatpush1.bf16.msra.mxu0 %v126
    %143 = vmatprep.subr.bf16.mxu0 0
    %144 = vmatpush1.bf16.msra.mxu0 0
    %145 = vmatprep.subr.bf16.mxu0 0
    %146 = vmatpush1.bf16.msra.mxu0 0
    %147 = vmatprep.subr.bf16.mxu0 0
    %148 = vmatpush1.bf16.msra.mxu0 0
    %149 = vmatprep.subr.bf16.mxu0 0
    %150 = vmatpush1.bf16.msra.mxu0 0
    %151 = vmatprep.subr.bf16.mxu0 0
    %152 = vmatpush1.bf16.msra.mxu0 0
    %153 = vmatprep.subr.bf16.mxu0 0
    %154 = vmatpush1.bf16.msra.mxu0 0
    %155 = vmatprep.subr.bf16.mxu0 0
    %156 = vmatpush1.bf16.msra.mxu0 0
    %157 = vmatprep.subr.bf16.mxu0 0
    %158 = vmatpush1.bf16.msra.mxu0 0
    %159 = vmatprep.subr.bf16.mxu0 0
    %160 = vmatpush1.bf16.msra.mxu0 0
    %161 = vmatprep.subr.bf16.mxu0 0
    %162 = vmatpush1.bf16.msra.mxu0 0
    %163 = vmatprep.subr.bf16.mxu0 0
    %164 = vmatpush1.bf16.msra.mxu0 0
    %165 = vmatprep.subr.bf16.mxu0 0
    %166 = vmatpush1.bf16.msra.mxu0 0
    %167 = vmatprep.mubr.bf16.mxu0 0
    %168 = vmatmul.mubr.bf16.gmra.mrb[0].mxu0 %v133
    %v169 = vpop.f32.mrb[0].mxu0
    %v170 = vadd.f32 %v106, %v169
    %v171 = vpop.f32.mrb[0].mxu0
    %v172 = vpop.f32.mrb[0].mxu0
    %v173 = vadd.f32 %v106, %v172
    %v174 = vpop.f32.mrb[0].mxu0
    %175 = vdwg.mxu0
    %v176 = vmax.f32 %v170, 0.0
    %v177 = vmax.f32 %v173, 0.0
    %v178 = vpack.c.bf16 %v177, %v176
    %v179 = vlaneseq
    %v180 = vshrl.u32 %v179, 7
    %v181 = vsub.s32 1, %v180
    %v182 = vrot.slane %v99, %v181
    %v191 = vunpack.c.l.b16 %v83
    %v192 = vunpack.c.l.b16 %v84
    %v193 = vunpack.c.l.b16 %v85
    %v194 = vunpack.c.l.b16 %v86
    %v195 = vunpack.c.l.b16 %v87
    %v196 = vunpack.c.l.b16 %v88
    %v197 = vunpack.c.l.b16 %v89
    %v198 = vunpack.c.l.b16 %v90
    %v199 = vpack.c.b16 %v192, %v191
    %v200 = vpack.c.b16 %v194, %v193
    %v201 = vpack.c.b16 %v196, %v195
    %v202 = vpack.c.b16 %v198, %v197
    %v208 = vsel %vm131, %v178, 0
    %210 = vmatprep.subr.bf16.mxu0 0
    %211 = vmatpush1.bf16.msra.mxu0 %v199
    %212 = vmatprep.subr.bf16.mxu0 0
    %213 = vmatpush1.bf16.msra.mxu0 %v200
    %214 = vmatprep.subr.bf16.mxu0 0
    %215 = vmatpush1.bf16.msra.mxu0 %v201
    %216 = vmatprep.subr.bf16.mxu0 0
    %217 = vmatpush1.bf16.msra.mxu0 %v202
    %218 = vmatprep.subr.bf16.mxu0 0
    %219 = vmatpush1.bf16.msra.mxu0 0
    %220 = vmatprep.subr.bf16.mxu0 0
    %221 = vmatpush1.bf16.msra.mxu0 0
    %222 = vmatprep.subr.bf16.mxu0 0
    %223 = vmatpush1.bf16.msra.mxu0 0
    %224 = vmatprep.subr.bf16.mxu0 0
    %225 = vmatpush1.bf16.msra.mxu0 0
    %226 = vmatprep.subr.bf16.mxu0 0
    %227 = vmatpush1.bf16.msra.mxu0 0
    %228 = vmatprep.subr.bf16.mxu0 0
    %229 = vmatpush1.bf16.msra.mxu0 0
    %230 = vmatprep.subr.bf16.mxu0 0
    %231 = vmatpush1.bf16.msra.mxu0 0
    %232 = vmatprep.subr.bf16.mxu0 0
    %233 = vmatpush1.bf16.msra.mxu0 0
    %234 = vmatprep.subr.bf16.mxu0 0
    %235 = vmatpush1.bf16.msra.mxu0 0
    %236 = vmatprep.subr.bf16.mxu0 0
    %237 = vmatpush1.bf16.msra.mxu0 0
    %238 = vmatprep.subr.bf16.mxu0 0
    %239 = vmatpush1.bf16.msra.mxu0 0
    %240 = vmatprep.subr.bf16.mxu0 0
    %241 = vmatpush1.bf16.msra.mxu0 0
    %242 = vmatprep.mubr.bf16.mxu0 0
    %243 = vmatmul.mubr.bf16.gmra.mrb[0].mxu0 %v208
    %v244 = vpop.f32.mrb[0].mxu0
    %v245 = vadd.f32 %v182, %v244
    %v246 = vpop.f32.mrb[0].mxu0
    %v247 = vpop.f32.mrb[0].mxu0
    %v248 = vadd.f32 %v182, %v247
    %v249 = vpop.f32.mrb[0].mxu0
    %250 = vdwg.mxu0
    %v251 = vmax.f32 %v245, 0.0
    %v252 = vmax.f32 %v248, 0.0
    %v253 = vpack.c.bf16 %v252, %v251
    %v254 = vlaneseq
    %v255 = vshrl.u32 %v254, 7
    %v256 = vsub.s32 2, %v255
    %v257 = vrot.slane %v99, %v256
    %v266 = vunpack.c.l.b16 %v91
    %v267 = vunpack.c.l.b16 %v92
    %v268 = vunpack.c.l.b16 %v93
    %v269 = vunpack.c.l.b16 %v94
    %v270 = vunpack.c.l.b16 %v95
    %v271 = vunpack.c.l.b16 %v96
    %v272 = vunpack.c.l.b16 %v97
    %v273 = vunpack.c.l.b16 %v98
    %v274 = vpack.c.b16 %v267, %v266
    %v275 = vpack.c.b16 %v269, %v268
    %v276 = vpack.c.b16 %v271, %v270
    %v277 = vpack.c.b16 %v273, %v272
    %v283 = vsel %vm131, %v253, 0
    %285 = vmatprep.subr.bf16.mxu0 0
    %286 = vmatpush1.bf16.msra.mxu0 %v274
    %287 = vmatprep.subr.bf16.mxu0 0
    %288 = vmatpush1.bf16.msra.mxu0 %v275
    %289 = vmatprep.subr.bf16.mxu0 0
    %290 = vmatpush1.bf16.msra.mxu0 %v276
    %291 = vmatprep.subr.bf16.mxu0 0
    %292 = vmatpush1.bf16.msra.mxu0 %v277
    %293 = vmatprep.subr.bf16.mxu0 0
    %294 = vmatpush1.bf16.msra.mxu0 0
    %295 = vmatprep.subr.bf16.mxu0 0
    %296 = vmatpush1.bf16.msra.mxu0 0
    %297 = vmatprep.subr.bf16.mxu0 0
    %298 = vmatpush1.bf16.msra.mxu0 0
    %299 = vmatprep.subr.bf16.mxu0 0
    %300 = vmatpush1.bf16.msra.mxu0 0
    %301 = vmatprep.subr.bf16.mxu0 0
    %302 = vmatpush1.bf16.msra.mxu0 0
    %303 = vmatprep.subr.bf16.mxu0 0
    %304 = vmatpush1.bf16.msra.mxu0 0
    %305 = vmatprep.subr.bf16.mxu0 0
    %306 = vmatpush1.bf16.msra.mxu0 0
    %307 = vmatprep.subr.bf16.mxu0 0
    %308 = vmatpush1.bf16.msra.mxu0 0
    %309 = vmatprep.subr.bf16.mxu0 0
    %310 = vmatpush1.bf16.msra.mxu0 0
    %311 = vmatprep.subr.bf16.mxu0 0
    %312 = vmatpush1.bf16.msra.mxu0 0
    %313 = vmatprep.subr.bf16.mxu0 0
    %314 = vmatpush1.bf16.msra.mxu0 0
    %315 = vmatprep.subr.bf16.mxu0 0
    %316 = vmatpush1.bf16.msra.mxu0 0
    %317 = vmatprep.mubr.bf16.mxu0 0
    %318 = vmatmul.mubr.bf16.gmra.mrb[0].mxu0 %v283
    %v319 = vpop.f32.mrb[0].mxu0
    %v320 = vadd.f32 %v257, %v319
    %v321 = vpop.f32.mrb[0].mxu0
    %v322 = vpop.f32.mrb[0].mxu0
    %v323 = vadd.f32 %v257, %v322
    %v324 = vpop.f32.mrb[0].mxu0
    %325 = vdwg.mxu0
    %v326 = vpack.c.bf16 %v323, %v320
    %v328 = vshrl.u32 %v100, 16
    %v330 = vrot.slane %v328, 1
    %vm331 = vcmask 539648
    %v333 = vsel %vm331, %v330, 0
    %v336 = vsel %vm331, %v326, 0
    %338 = vmatprep.subr.bf16.mxu0 0
    %339 = vmatpush1.bf16.xpose.msra.mxu0 %v336
    %340 = vmatprep.subr.bf16.mxu0 0
    %341 = vmatpush1.bf16.xpose.msra.mxu0 0
    %342 = vmatprep.subr.bf16.mxu0 0
    %343 = vmatpush1.bf16.xpose.msra.mxu0 0
    %344 = vmatprep.subr.bf16.mxu0 0
    %345 = vmatpush1.bf16.xpose.msra.mxu0 0
    %346 = vmatprep.subr.bf16.mxu0 0
    %347 = vmatpush1.bf16.xpose.msra.mxu0 0
    %348 = vmatprep.subr.bf16.mxu0 0
    %349 = vmatpush1.bf16.xpose.msra.mxu0 0
    %350 = vmatprep.subr.bf16.mxu0 0
    %351 = vmatpush1.bf16.xpose.msra.mxu0 0
    %352 = vmatprep.subr.bf16.mxu0 0
    %353 = vmatpush1.bf16.xpose.msra.mxu0 0
    %354 = vmatprep.subr.bf16.mxu0 0
    %355 = vmatpush1.bf16.xpose.msra.mxu0 0
    %356 = vmatprep.subr.bf16.mxu0 0
    %357 = vmatpush1.bf16.xpose.msra.mxu0 0
    %358 = vmatprep.subr.bf16.mxu0 0
    %359 = vmatpush1.bf16.xpose.msra.mxu0 0
    %360 = vmatprep.subr.bf16.mxu0 0
    %361 = vmatpush1.bf16.xpose.msra.mxu0 0
    %362 = vmatprep.subr.bf16.mxu0 0
    %363 = vmatpush1.bf16.xpose.msra.mxu0 0
    %364 = vmatprep.subr.bf16.mxu0 0
    %365 = vmatpush1.bf16.xpose.msra.mxu0 0
    %366 = vmatprep.subr.bf16.mxu0 0
    %367 = vmatpush1.bf16.xpose.msra.mxu0 0
    %368 = vmatprep.subr.bf16.mxu0 0
    %369 = vmatpush1.bf16.xpose.msra.mxu0 0
    %370 = vmatprep.mubr.bf16.mxu0 0
    %371 = vmatmul.mubr.bf16.gmra.mrb[0].mxu0 %v333
    %v372 = vpop.f32.mrb[0].mxu0
    %v373 = vadd.f32 0.0, %v372
    %v374 = vpop.f32.mrb[0].mxu0
    %v375 = vpop.f32.mrb[0].mxu0
    %v376 = vpop.f32.mrb[0].mxu0
    %377 = vdwg.mxu0
    %379 = vset.pattern.permute.xlu0 64
    %380 = vperm.xlu0 %379, %v320
    %v381 = vpop.permute.xlu0 %380
    %384 = vset.pattern.permute.xlu0 64
    %385 = vperm.xlu0 %384, %v323
    %v386 = vpop.permute.xlu0 %385
    %v388 = vlaneseq
    %v389 = vshrl.u32 %v388, 7
    %v390 = vsub.s32 0, %v389
    %v391 = vrot.slane %v373, %v390
    %v392 = vadd.f32 %v381, %v391
    %v393 = vadd.f32 %v386, %v391
    %v394 = vunpack.c.l.bf16 %v65
    %v395 = vunpack.c.l.bf16 %v66
    %v396 = vstv %s101
    %v397 = vmul.f32 %v394, %v396
    %v398 = vmul.f32 %v395, %v396
    %v399 = vadd.f32 %v392, %v397
    %v400 = vadd.f32 %v393, %v398
    %v401 = vmul.f32 %v399, 0.2
    %v402 = vmul.f32 %v400, 0.2
    %v403 = vmax.f32 %v399, %v401
    %v404 = vmax.f32 %v400, %v402
    %v405 = vadd.f32 %v403, %v71
    %v406 = vadd.f32 %v404, %v72
    %vm407 = vcmask 130048
    %v408 = vsel %vm407, %v405, -inf
    %409 = vmax.xlane.f32.xlu0 %v408
    %v410 = vpop.xlane.xlu0 %409
    %v411 = vsel %vm407, %v406, -inf
    %412 = vmax.xlane.f32.xlu0 %v411
    %v413 = vpop.xlane.xlu0 %412
    %v414 = vmax.f32 %v410, -1e+29
    %v415 = vmax.f32 %v413, -1e+29
    %v416 = vsub.f32 %v405, %v414
    %v417 = vsub.f32 %v406, %v415
    %v418 = vmul.f32 %v416, 1.442695
    %v419 = vpow.pop %v418
    %v420 = vmul.f32 %v417, 1.442695
    %v421 = vpow.pop %v420
    %v422 = vpack.c.bf16 %v421, %v419
    %v424 = vsel %vm407, %v422, 0
    %426 = vmatprep.subr.bf16.mxu0 0
    %427 = vmatpush1.bf16.msra.mxu0 %v326
    %428 = vmatprep.subr.bf16.mxu0 0
    %429 = vmatpush1.bf16.msra.mxu0 0
    %430 = vmatprep.subr.bf16.mxu0 0
    %431 = vmatpush1.bf16.msra.mxu0 0
    %432 = vmatprep.subr.bf16.mxu0 0
    %433 = vmatpush1.bf16.msra.mxu0 0
    %434 = vmatprep.subr.bf16.mxu0 0
    %435 = vmatpush1.bf16.msra.mxu0 0
    %436 = vmatprep.subr.bf16.mxu0 0
    %437 = vmatpush1.bf16.msra.mxu0 0
    %438 = vmatprep.subr.bf16.mxu0 0
    %439 = vmatpush1.bf16.msra.mxu0 0
    %440 = vmatprep.subr.bf16.mxu0 0
    %441 = vmatpush1.bf16.msra.mxu0 0
    %442 = vmatprep.subr.bf16.mxu0 0
    %443 = vmatpush1.bf16.msra.mxu0 0
    %444 = vmatprep.subr.bf16.mxu0 0
    %445 = vmatpush1.bf16.msra.mxu0 0
    %446 = vmatprep.subr.bf16.mxu0 0
    %447 = vmatpush1.bf16.msra.mxu0 0
    %448 = vmatprep.subr.bf16.mxu0 0
    %449 = vmatpush1.bf16.msra.mxu0 0
    %450 = vmatprep.subr.bf16.mxu0 0
    %451 = vmatpush1.bf16.msra.mxu0 0
    %452 = vmatprep.subr.bf16.mxu0 0
    %453 = vmatpush1.bf16.msra.mxu0 0
    %454 = vmatprep.subr.bf16.mxu0 0
    %455 = vmatpush1.bf16.msra.mxu0 0
    %456 = vmatprep.subr.bf16.mxu0 0
    %457 = vmatpush1.bf16.msra.mxu0 0
    %458 = vmatprep.mubr.bf16.mxu0 0
    %459 = vmatmul.mubr.bf16.gmra.mrb[0].mxu0 %v424
    %v460 = vpop.f32.mrb[0].mxu0
    %v461 = vadd.f32 0.0, %v460
    %v462 = vpop.f32.mrb[0].mxu0
    %v463 = vpop.f32.mrb[0].mxu0
    %v464 = vadd.f32 0.0, %v463
    %v465 = vpop.f32.mrb[0].mxu0
    %466 = vdwg.mxu0
    %v467 = vmax.f32 %v461, 1e-16
    %v468 = vmax.f32 %v464, 1e-16
    %v469 = vrcp.pop %v467
    %v470 = vrcp.pop %v468
    %472 = vset.pattern.permute.xlu0 65
    %473 = vperm.xlu0 %472, %v469
    %v474 = vpop.permute.xlu0 %473
    %477 = vset.pattern.permute.xlu0 65
    %478 = vperm.xlu0 %477, %v470
    %v479 = vpop.permute.xlu0 %478
    %v481 = vmul.f32 %v461, %v474
    %v482 = vmul.f32 %v464, %v479
    %s483 = scalar_lea.vmem %s5, 32
    %v484 = vld [vmem:[%s483] sm:$0xf]
    %v485 = vld [vmem:[%s483 + $0x4] sm:$0xf]
    %v486 = vld [vmem:[%s483 + $0x8] sm:$0xf]
    %v487 = vld [vmem:[%s483 + $0xc] sm:$0xf]
    %v488 = vld [vmem:[%s483 + $0x10] sm:$0xf]
    %v489 = vld [vmem:[%s483 + $0x14] sm:$0xf]
    %v490 = vld [vmem:[%s483 + $0x18] sm:$0xf]
    %v491 = vld [vmem:[%s483 + $0x1c] sm:$0xf]
    %s492 = scalar_lea.vmem %s6, 32
    %v493 = vld [vmem:[%s492] sm:$0xf]
    %v494 = vld [vmem:[%s492 + $0x4] sm:$0xf]
    %v495 = vld [vmem:[%s492 + $0x8] sm:$0xf]
    %v496 = vld [vmem:[%s492 + $0xc] sm:$0xf]
    %v497 = vld [vmem:[%s492 + $0x10] sm:$0xf]
    %v498 = vld [vmem:[%s492 + $0x14] sm:$0xf]
    %v499 = vld [vmem:[%s492 + $0x18] sm:$0xf]
    %v500 = vld [vmem:[%s492 + $0x1c] sm:$0xf]
    %s501 = scalar_lea.vmem %s7, 32
    %v502 = vld [vmem:[%s501] sm:$0xf]
    %v503 = vld [vmem:[%s501 + $0x4] sm:$0xf]
    %v504 = vld [vmem:[%s501 + $0x8] sm:$0xf]
    %v505 = vld [vmem:[%s501 + $0xc] sm:$0xf]
    %v506 = vld [vmem:[%s501 + $0x10] sm:$0xf]
    %v507 = vld [vmem:[%s501 + $0x14] sm:$0xf]
    %v508 = vld [vmem:[%s501 + $0x18] sm:$0xf]
    %v509 = vld [vmem:[%s501 + $0x1c] sm:$0xf]
    %s510 = scalar_lea.vmem %s8, 4
    %v511 = vld [vmem:[%s510] sm:$0xf]
    %v512 = vpack.c.bf16 %v511, %v511
    %s513 = sld [smem:[#allocation3 + $0x1]]
    %v514 = vpack.c.bf16 %v482, %v481
    %v515 = vlaneseq
    %v516 = vshrl.u32 %v515, 7
    %v517 = vsub.s32 0, %v516
    %v518 = vrot.slane %v511, %v517
    %v527 = vunpack.c.l.b16 %v484
    %v528 = vunpack.c.l.b16 %v485
    %v529 = vunpack.c.l.b16 %v486
    %v530 = vunpack.c.l.b16 %v487
    %v531 = vunpack.c.l.b16 %v488
    %v532 = vunpack.c.l.b16 %v489
    %v533 = vunpack.c.l.b16 %v490
    %v534 = vunpack.c.l.b16 %v491
    %v535 = vpack.c.b16 %v528, %v527
    %v536 = vpack.c.b16 %v530, %v529
    %v537 = vpack.c.b16 %v532, %v531
    %v538 = vpack.c.b16 %v534, %v533
    %v544 = vsel %vm131, %v514, 0
    %546 = vmatprep.subr.bf16.mxu0 0
    %547 = vmatpush1.bf16.msra.mxu0 %v535
    %548 = vmatprep.subr.bf16.mxu0 0
    %549 = vmatpush1.bf16.msra.mxu0 %v536
    %550 = vmatprep.subr.bf16.mxu0 0
    %551 = vmatpush1.bf16.msra.mxu0 %v537
    %552 = vmatprep.subr.bf16.mxu0 0
    %553 = vmatpush1.bf16.msra.mxu0 %v538
    %554 = vmatprep.subr.bf16.mxu0 0
    %555 = vmatpush1.bf16.msra.mxu0 0
    %556 = vmatprep.subr.bf16.mxu0 0
    %557 = vmatpush1.bf16.msra.mxu0 0
    %558 = vmatprep.subr.bf16.mxu0 0
    %559 = vmatpush1.bf16.msra.mxu0 0
    %560 = vmatprep.subr.bf16.mxu0 0
    %561 = vmatpush1.bf16.msra.mxu0 0
    %562 = vmatprep.subr.bf16.mxu0 0
    %563 = vmatpush1.bf16.msra.mxu0 0
    %564 = vmatprep.subr.bf16.mxu0 0
    %565 = vmatpush1.bf16.msra.mxu0 0
    %566 = vmatprep.subr.bf16.mxu0 0
    %567 = vmatpush1.bf16.msra.mxu0 0
    %568 = vmatprep.subr.bf16.mxu0 0
    %569 = vmatpush1.bf16.msra.mxu0 0
    %570 = vmatprep.subr.bf16.mxu0 0
    %571 = vmatpush1.bf16.msra.mxu0 0
    %572 = vmatprep.subr.bf16.mxu0 0
    %573 = vmatpush1.bf16.msra.mxu0 0
    %574 = vmatprep.subr.bf16.mxu0 0
    %575 = vmatpush1.bf16.msra.mxu0 0
    %576 = vmatprep.subr.bf16.mxu0 0
    %577 = vmatpush1.bf16.msra.mxu0 0
    %578 = vmatprep.mubr.bf16.mxu0 0
    %579 = vmatmul.mubr.bf16.gmra.mrb[0].mxu0 %v544
    %v580 = vpop.f32.mrb[0].mxu0
    %v581 = vadd.f32 %v518, %v580
    %v582 = vpop.f32.mrb[0].mxu0
    %v583 = vpop.f32.mrb[0].mxu0
    %v584 = vadd.f32 %v518, %v583
    %v585 = vpop.f32.mrb[0].mxu0
    %586 = vdwg.mxu0
    %v587 = vmax.f32 %v581, 0.0
    %v588 = vmax.f32 %v584, 0.0
    %v589 = vpack.c.bf16 %v588, %v587
    %v590 = vlaneseq
    %v591 = vshrl.u32 %v590, 7
    %v592 = vsub.s32 1, %v591
    %v593 = vrot.slane %v511, %v592
    %v602 = vunpack.c.l.b16 %v493
    %v603 = vunpack.c.l.b16 %v494
    %v604 = vunpack.c.l.b16 %v495
    %v605 = vunpack.c.l.b16 %v496
    %v606 = vunpack.c.l.b16 %v497
    %v607 = vunpack.c.l.b16 %v498
    %v608 = vunpack.c.l.b16 %v499
    %v609 = vunpack.c.l.b16 %v500
    %v610 = vpack.c.b16 %v603, %v602
    %v611 = vpack.c.b16 %v605, %v604
    %v612 = vpack.c.b16 %v607, %v606
    %v613 = vpack.c.b16 %v609, %v608
    %v619 = vsel %vm131, %v589, 0
    %621 = vmatprep.subr.bf16.mxu0 0
    %622 = vmatpush1.bf16.msra.mxu0 %v610
    %623 = vmatprep.subr.bf16.mxu0 0
    %624 = vmatpush1.bf16.msra.mxu0 %v611
    %625 = vmatprep.subr.bf16.mxu0 0
    %626 = vmatpush1.bf16.msra.mxu0 %v612
    %627 = vmatprep.subr.bf16.mxu0 0
    %628 = vmatpush1.bf16.msra.mxu0 %v613
    %629 = vmatprep.subr.bf16.mxu0 0
    %630 = vmatpush1.bf16.msra.mxu0 0
    %631 = vmatprep.subr.bf16.mxu0 0
    %632 = vmatpush1.bf16.msra.mxu0 0
    %633 = vmatprep.subr.bf16.mxu0 0
    %634 = vmatpush1.bf16.msra.mxu0 0
    %635 = vmatprep.subr.bf16.mxu0 0
    %636 = vmatpush1.bf16.msra.mxu0 0
    %637 = vmatprep.subr.bf16.mxu0 0
    %638 = vmatpush1.bf16.msra.mxu0 0
    %639 = vmatprep.subr.bf16.mxu0 0
    %640 = vmatpush1.bf16.msra.mxu0 0
    %641 = vmatprep.subr.bf16.mxu0 0
    %642 = vmatpush1.bf16.msra.mxu0 0
    %643 = vmatprep.subr.bf16.mxu0 0
    %644 = vmatpush1.bf16.msra.mxu0 0
    %645 = vmatprep.subr.bf16.mxu0 0
    %646 = vmatpush1.bf16.msra.mxu0 0
    %647 = vmatprep.subr.bf16.mxu0 0
    %648 = vmatpush1.bf16.msra.mxu0 0
    %649 = vmatprep.subr.bf16.mxu0 0
    %650 = vmatpush1.bf16.msra.mxu0 0
    %651 = vmatprep.subr.bf16.mxu0 0
    %652 = vmatpush1.bf16.msra.mxu0 0
    %653 = vmatprep.mubr.bf16.mxu0 0
    %654 = vmatmul.mubr.bf16.gmra.mrb[0].mxu0 %v619
    %v655 = vpop.f32.mrb[0].mxu0
    %v656 = vadd.f32 %v593, %v655
    %v657 = vpop.f32.mrb[0].mxu0
    %v658 = vpop.f32.mrb[0].mxu0
    %v659 = vadd.f32 %v593, %v658
    %v660 = vpop.f32.mrb[0].mxu0
    %661 = vdwg.mxu0
    %v662 = vmax.f32 %v656, 0.0
    %v663 = vmax.f32 %v659, 0.0
    %v664 = vpack.c.bf16 %v663, %v662
    %v665 = vlaneseq
    %v666 = vshrl.u32 %v665, 7
    %v667 = vsub.s32 2, %v666
    %v668 = vrot.slane %v511, %v667
    %v677 = vunpack.c.l.b16 %v502
    %v678 = vunpack.c.l.b16 %v503
    %v679 = vunpack.c.l.b16 %v504
    %v680 = vunpack.c.l.b16 %v505
    %v681 = vunpack.c.l.b16 %v506
    %v682 = vunpack.c.l.b16 %v507
    %v683 = vunpack.c.l.b16 %v508
    %v684 = vunpack.c.l.b16 %v509
    %v685 = vpack.c.b16 %v678, %v677
    %v686 = vpack.c.b16 %v680, %v679
    %v687 = vpack.c.b16 %v682, %v681
    %v688 = vpack.c.b16 %v684, %v683
    %v694 = vsel %vm131, %v664, 0
    %696 = vmatprep.subr.bf16.mxu0 0
    %697 = vmatpush1.bf16.msra.mxu0 %v685
    %698 = vmatprep.subr.bf16.mxu0 0
    %699 = vmatpush1.bf16.msra.mxu0 %v686
    %700 = vmatprep.subr.bf16.mxu0 0
    %701 = vmatpush1.bf16.msra.mxu0 %v687
    %702 = vmatprep.subr.bf16.mxu0 0
    %703 = vmatpush1.bf16.msra.mxu0 %v688
    %704 = vmatprep.subr.bf16.mxu0 0
    %705 = vmatpush1.bf16.msra.mxu0 0
    %706 = vmatprep.subr.bf16.mxu0 0
    %707 = vmatpush1.bf16.msra.mxu0 0
    %708 = vmatprep.subr.bf16.mxu0 0
    %709 = vmatpush1.bf16.msra.mxu0 0
    %710 = vmatprep.subr.bf16.mxu0 0
    %711 = vmatpush1.bf16.msra.mxu0 0
    %712 = vmatprep.subr.bf16.mxu0 0
    %713 = vmatpush1.bf16.msra.mxu0 0
    %714 = vmatprep.subr.bf16.mxu0 0
    %715 = vmatpush1.bf16.msra.mxu0 0
    %716 = vmatprep.subr.bf16.mxu0 0
    %717 = vmatpush1.bf16.msra.mxu0 0
    %718 = vmatprep.subr.bf16.mxu0 0
    %719 = vmatpush1.bf16.msra.mxu0 0
    %720 = vmatprep.subr.bf16.mxu0 0
    %721 = vmatpush1.bf16.msra.mxu0 0
    %722 = vmatprep.subr.bf16.mxu0 0
    %723 = vmatpush1.bf16.msra.mxu0 0
    %724 = vmatprep.subr.bf16.mxu0 0
    %725 = vmatpush1.bf16.msra.mxu0 0
    %726 = vmatprep.subr.bf16.mxu0 0
    %727 = vmatpush1.bf16.msra.mxu0 0
    %728 = vmatprep.mubr.bf16.mxu0 0
    %729 = vmatmul.mubr.bf16.gmra.mrb[0].mxu0 %v694
    %v730 = vpop.f32.mrb[0].mxu0
    %v731 = vadd.f32 %v668, %v730
    %v732 = vpop.f32.mrb[0].mxu0
    %v733 = vpop.f32.mrb[0].mxu0
    %v734 = vadd.f32 %v668, %v733
    %v735 = vpop.f32.mrb[0].mxu0
    %736 = vdwg.mxu0
    %v737 = vpack.c.bf16 %v734, %v731
    %v739 = vshrl.u32 %v512, 16
    %v741 = vrot.slane %v739, 1
    %v743 = vsel %vm331, %v741, 0
    %v746 = vsel %vm331, %v737, 0
    %748 = vmatprep.subr.bf16.mxu0 0
    %749 = vmatpush1.bf16.xpose.msra.mxu0 %v746
    %750 = vmatprep.subr.bf16.mxu0 0
    %751 = vmatpush1.bf16.xpose.msra.mxu0 0
    %752 = vmatprep.subr.bf16.mxu0 0
    %753 = vmatpush1.bf16.xpose.msra.mxu0 0
    %754 = vmatprep.subr.bf16.mxu0 0
    %755 = vmatpush1.bf16.xpose.msra.mxu0 0
    %756 = vmatprep.subr.bf16.mxu0 0
    %757 = vmatpush1.bf16.xpose.msra.mxu0 0
    %758 = vmatprep.subr.bf16.mxu0 0
    %759 = vmatpush1.bf16.xpose.msra.mxu0 0
    %760 = vmatprep.subr.bf16.mxu0 0
    %761 = vmatpush1.bf16.xpose.msra.mxu0 0
    %762 = vmatprep.subr.bf16.mxu0 0
    %763 = vmatpush1.bf16.xpose.msra.mxu0 0
    %764 = vmatprep.subr.bf16.mxu0 0
    %765 = vmatpush1.bf16.xpose.msra.mxu0 0
    %766 = vmatprep.subr.bf16.mxu0 0
    %767 = vmatpush1.bf16.xpose.msra.mxu0 0
    %768 = vmatprep.subr.bf16.mxu0 0
    %769 = vmatpush1.bf16.xpose.msra.mxu0 0
    %770 = vmatprep.subr.bf16.mxu0 0
    %771 = vmatpush1.bf16.xpose.msra.mxu0 0
    %772 = vmatprep.subr.bf16.mxu0 0
    %773 = vmatpush1.bf16.xpose.msra.mxu0 0
    %774 = vmatprep.subr.bf16.mxu0 0
    %775 = vmatpush1.bf16.xpose.msra.mxu0 0
    %776 = vmatprep.subr.bf16.mxu0 0
    %777 = vmatpush1.bf16.xpose.msra.mxu0 0
    %778 = vmatprep.subr.bf16.mxu0 0
    %779 = vmatpush1.bf16.xpose.msra.mxu0 0
    %780 = vmatprep.mubr.bf16.mxu0 0
    %781 = vmatmul.mubr.bf16.gmra.mrb[0].mxu0 %v743
    %v782 = vpop.f32.mrb[0].mxu0
    %v783 = vadd.f32 0.0, %v782
    %v784 = vpop.f32.mrb[0].mxu0
    %v785 = vpop.f32.mrb[0].mxu0
    %v786 = vpop.f32.mrb[0].mxu0
    %787 = vdwg.mxu0
    %789 = vset.pattern.permute.xlu0 64
    %790 = vperm.xlu0 %789, %v731
    %v791 = vpop.permute.xlu0 %790
    %794 = vset.pattern.permute.xlu0 64
    %795 = vperm.xlu0 %794, %v734
    %v796 = vpop.permute.xlu0 %795
    %v798 = vlaneseq
    %v799 = vshrl.u32 %v798, 7
    %v800 = vsub.s32 0, %v799
    %v801 = vrot.slane %v783, %v800
    %v802 = vadd.f32 %v791, %v801
    %v803 = vadd.f32 %v796, %v801
    %v804 = vstv %s513
    %v805 = vmul.f32 %v394, %v804
    %v806 = vmul.f32 %v395, %v804
    %v807 = vadd.f32 %v802, %v805
    %v808 = vadd.f32 %v803, %v806
    %v809 = vmul.f32 %v807, 0.2
    %v810 = vmul.f32 %v808, 0.2
    %v811 = vmax.f32 %v807, %v809
    %v812 = vmax.f32 %v808, %v810
    %v813 = vadd.f32 %v811, %v71
    %v814 = vadd.f32 %v812, %v72
    %v815 = vsel %vm407, %v813, -inf
    %816 = vmax.xlane.f32.xlu0 %v815
    %v817 = vpop.xlane.xlu0 %816
    %v818 = vsel %vm407, %v814, -inf
    %819 = vmax.xlane.f32.xlu0 %v818
    %v820 = vpop.xlane.xlu0 %819
    %v821 = vmax.f32 %v817, -1e+29
    %v822 = vmax.f32 %v820, -1e+29
    %v823 = vsub.f32 %v813, %v821
    %v824 = vsub.f32 %v814, %v822
    %v825 = vmul.f32 %v823, 1.442695
    %v826 = vpow.pop %v825
    %v827 = vmul.f32 %v824, 1.442695
    %v828 = vpow.pop %v827
    %v829 = vpack.c.bf16 %v828, %v826
    %v831 = vsel %vm407, %v829, 0
    %833 = vmatprep.subr.bf16.mxu0 0
    %834 = vmatpush1.bf16.msra.mxu0 %v737
    %835 = vmatprep.subr.bf16.mxu0 0
    %836 = vmatpush1.bf16.msra.mxu0 0
    %837 = vmatprep.subr.bf16.mxu0 0
    %838 = vmatpush1.bf16.msra.mxu0 0
    %839 = vmatprep.subr.bf16.mxu0 0
    %840 = vmatpush1.bf16.msra.mxu0 0
    %841 = vmatprep.subr.bf16.mxu0 0
    %842 = vmatpush1.bf16.msra.mxu0 0
    %843 = vmatprep.subr.bf16.mxu0 0
    %844 = vmatpush1.bf16.msra.mxu0 0
    %845 = vmatprep.subr.bf16.mxu0 0
    %846 = vmatpush1.bf16.msra.mxu0 0
    %847 = vmatprep.subr.bf16.mxu0 0
    %848 = vmatpush1.bf16.msra.mxu0 0
    %849 = vmatprep.subr.bf16.mxu0 0
    %850 = vmatpush1.bf16.msra.mxu0 0
    %851 = vmatprep.subr.bf16.mxu0 0
    %852 = vmatpush1.bf16.msra.mxu0 0
    %853 = vmatprep.subr.bf16.mxu0 0
    %854 = vmatpush1.bf16.msra.mxu0 0
    %855 = vmatprep.subr.bf16.mxu0 0
    %856 = vmatpush1.bf16.msra.mxu0 0
    %857 = vmatprep.subr.bf16.mxu0 0
    %858 = vmatpush1.bf16.msra.mxu0 0
    %859 = vmatprep.subr.bf16.mxu0 0
    %860 = vmatpush1.bf16.msra.mxu0 0
    %861 = vmatprep.subr.bf16.mxu0 0
    %862 = vmatpush1.bf16.msra.mxu0 0
    %863 = vmatprep.subr.bf16.mxu0 0
    %864 = vmatpush1.bf16.msra.mxu0 0
    %865 = vmatprep.mubr.bf16.mxu0 0
    %866 = vmatmul.mubr.bf16.gmra.mrb[0].mxu0 %v831
    %v867 = vpop.f32.mrb[0].mxu0
    %v868 = vadd.f32 0.0, %v867
    %v869 = vpop.f32.mrb[0].mxu0
    %v870 = vpop.f32.mrb[0].mxu0
    %v871 = vadd.f32 0.0, %v870
    %v872 = vpop.f32.mrb[0].mxu0
    %873 = vdwg.mxu0
    %v874 = vmax.f32 %v868, 1e-16
    %v875 = vmax.f32 %v871, 1e-16
    %v876 = vrcp.pop %v874
    %v877 = vrcp.pop %v875
    %879 = vset.pattern.permute.xlu0 65
    %880 = vperm.xlu0 %879, %v876
    %v881 = vpop.permute.xlu0 %880
    %884 = vset.pattern.permute.xlu0 65
    %885 = vperm.xlu0 %884, %v877
    %v886 = vpop.permute.xlu0 %885
    %v888 = vmul.f32 %v868, %v881
    %v889 = vmul.f32 %v871, %v886
    %s890 = scalar_lea.vmem %s5, 64
    %v891 = vld [vmem:[%s890] sm:$0xf]
    %v892 = vld [vmem:[%s890 + $0x4] sm:$0xf]
    %v893 = vld [vmem:[%s890 + $0x8] sm:$0xf]
    %v894 = vld [vmem:[%s890 + $0xc] sm:$0xf]
    %v895 = vld [vmem:[%s890 + $0x10] sm:$0xf]
    %v896 = vld [vmem:[%s890 + $0x14] sm:$0xf]
    %v897 = vld [vmem:[%s890 + $0x18] sm:$0xf]
    %v898 = vld [vmem:[%s890 + $0x1c] sm:$0xf]
    %s899 = scalar_lea.vmem %s6, 64
    %v900 = vld [vmem:[%s899] sm:$0xf]
    %v901 = vld [vmem:[%s899 + $0x4] sm:$0xf]
    %v902 = vld [vmem:[%s899 + $0x8] sm:$0xf]
    %v903 = vld [vmem:[%s899 + $0xc] sm:$0xf]
    %v904 = vld [vmem:[%s899 + $0x10] sm:$0xf]
    %v905 = vld [vmem:[%s899 + $0x14] sm:$0xf]
    %v906 = vld [vmem:[%s899 + $0x18] sm:$0xf]
    %v907 = vld [vmem:[%s899 + $0x1c] sm:$0xf]
    %s908 = scalar_lea.vmem %s7, 64
    %v909 = vld [vmem:[%s908] sm:$0xf]
    %v910 = vld [vmem:[%s908 + $0x4] sm:$0xf]
    %v911 = vld [vmem:[%s908 + $0x8] sm:$0xf]
    %v912 = vld [vmem:[%s908 + $0xc] sm:$0xf]
    %v913 = vld [vmem:[%s908 + $0x10] sm:$0xf]
    %v914 = vld [vmem:[%s908 + $0x14] sm:$0xf]
    %v915 = vld [vmem:[%s908 + $0x18] sm:$0xf]
    %v916 = vld [vmem:[%s908 + $0x1c] sm:$0xf]
    %s917 = scalar_lea.vmem %s8, 8
    %v918 = vld [vmem:[%s917] sm:$0xf]
    %v919 = vpack.c.bf16 %v918, %v918
    %s920 = sld [smem:[#allocation3 + $0x2]]
    %v921 = vpack.c.bf16 %v889, %v888
    %v922 = vlaneseq
    %v923 = vshrl.u32 %v922, 7
    %v924 = vsub.s32 0, %v923
    %v925 = vrot.slane %v918, %v924
    %v934 = vunpack.c.l.b16 %v891
    %v935 = vunpack.c.l.b16 %v892
    %v936 = vunpack.c.l.b16 %v893
    %v937 = vunpack.c.l.b16 %v894
    %v938 = vunpack.c.l.b16 %v895
    %v939 = vunpack.c.l.b16 %v896
    %v940 = vunpack.c.l.b16 %v897
    %v941 = vunpack.c.l.b16 %v898
    %v942 = vpack.c.b16 %v935, %v934
    %v943 = vpack.c.b16 %v937, %v936
    %v944 = vpack.c.b16 %v939, %v938
    %v945 = vpack.c.b16 %v941, %v940
    %v951 = vsel %vm131, %v921, 0
    %953 = vmatprep.subr.bf16.mxu0 0
    %954 = vmatpush1.bf16.msra.mxu0 %v942
    %955 = vmatprep.subr.bf16.mxu0 0
    %956 = vmatpush1.bf16.msra.mxu0 %v943
    %957 = vmatprep.subr.bf16.mxu0 0
    %958 = vmatpush1.bf16.msra.mxu0 %v944
    %959 = vmatprep.subr.bf16.mxu0 0
    %960 = vmatpush1.bf16.msra.mxu0 %v945
    %961 = vmatprep.subr.bf16.mxu0 0
    %962 = vmatpush1.bf16.msra.mxu0 0
    %963 = vmatprep.subr.bf16.mxu0 0
    %964 = vmatpush1.bf16.msra.mxu0 0
    %965 = vmatprep.subr.bf16.mxu0 0
    %966 = vmatpush1.bf16.msra.mxu0 0
    %967 = vmatprep.subr.bf16.mxu0 0
    %968 = vmatpush1.bf16.msra.mxu0 0
    %969 = vmatprep.subr.bf16.mxu0 0
    %970 = vmatpush1.bf16.msra.mxu0 0
    %971 = vmatprep.subr.bf16.mxu0 0
    %972 = vmatpush1.bf16.msra.mxu0 0
    %973 = vmatprep.subr.bf16.mxu0 0
    %974 = vmatpush1.bf16.msra.mxu0 0
    %975 = vmatprep.subr.bf16.mxu0 0
    %976 = vmatpush1.bf16.msra.mxu0 0
    %977 = vmatprep.subr.bf16.mxu0 0
    %978 = vmatpush1.bf16.msra.mxu0 0
    %979 = vmatprep.subr.bf16.mxu0 0
    %980 = vmatpush1.bf16.msra.mxu0 0
    %981 = vmatprep.subr.bf16.mxu0 0
    %982 = vmatpush1.bf16.msra.mxu0 0
    %983 = vmatprep.subr.bf16.mxu0 0
    %984 = vmatpush1.bf16.msra.mxu0 0
    %985 = vmatprep.mubr.bf16.mxu0 0
    %986 = vmatmul.mubr.bf16.gmra.mrb[0].mxu0 %v951
    %v987 = vpop.f32.mrb[0].mxu0
    %v988 = vadd.f32 %v925, %v987
    %v989 = vpop.f32.mrb[0].mxu0
    %v990 = vpop.f32.mrb[0].mxu0
    %v991 = vadd.f32 %v925, %v990
    %v992 = vpop.f32.mrb[0].mxu0
    %993 = vdwg.mxu0
    %v994 = vmax.f32 %v988, 0.0
    %v995 = vmax.f32 %v991, 0.0
    %v996 = vpack.c.bf16 %v995, %v994
    %v997 = vlaneseq
    %v998 = vshrl.u32 %v997, 7
    %v999 = vsub.s32 1, %v998
    %v1000 = vrot.slane %v918, %v999
    %v1009 = vunpack.c.l.b16 %v900
    %v1010 = vunpack.c.l.b16 %v901
    %v1011 = vunpack.c.l.b16 %v902
    %v1012 = vunpack.c.l.b16 %v903
    %v1013 = vunpack.c.l.b16 %v904
    %v1014 = vunpack.c.l.b16 %v905
    %v1015 = vunpack.c.l.b16 %v906
    %v1016 = vunpack.c.l.b16 %v907
    %v1017 = vpack.c.b16 %v1010, %v1009
    %v1018 = vpack.c.b16 %v1012, %v1011
    %v1019 = vpack.c.b16 %v1014, %v1013
    %v1020 = vpack.c.b16 %v1016, %v1015
    %v1026 = vsel %vm131, %v996, 0
    %1028 = vmatprep.subr.bf16.mxu0 0
    %1029 = vmatpush1.bf16.msra.mxu0 %v1017
    %1030 = vmatprep.subr.bf16.mxu0 0
    %1031 = vmatpush1.bf16.msra.mxu0 %v1018
    %1032 = vmatprep.subr.bf16.mxu0 0
    %1033 = vmatpush1.bf16.msra.mxu0 %v1019
    %1034 = vmatprep.subr.bf16.mxu0 0
    %1035 = vmatpush1.bf16.msra.mxu0 %v1020
    %1036 = vmatprep.subr.bf16.mxu0 0
    %1037 = vmatpush1.bf16.msra.mxu0 0
    %1038 = vmatprep.subr.bf16.mxu0 0
    %1039 = vmatpush1.bf16.msra.mxu0 0
    %1040 = vmatprep.subr.bf16.mxu0 0
    %1041 = vmatpush1.bf16.msra.mxu0 0
    %1042 = vmatprep.subr.bf16.mxu0 0
    %1043 = vmatpush1.bf16.msra.mxu0 0
    %1044 = vmatprep.subr.bf16.mxu0 0
    %1045 = vmatpush1.bf16.msra.mxu0 0
    %1046 = vmatprep.subr.bf16.mxu0 0
    %1047 = vmatpush1.bf16.msra.mxu0 0
    %1048 = vmatprep.subr.bf16.mxu0 0
    %1049 = vmatpush1.bf16.msra.mxu0 0
    %1050 = vmatprep.subr.bf16.mxu0 0
    %1051 = vmatpush1.bf16.msra.mxu0 0
    %1052 = vmatprep.subr.bf16.mxu0 0
    %1053 = vmatpush1.bf16.msra.mxu0 0
    %1054 = vmatprep.subr.bf16.mxu0 0
    %1055 = vmatpush1.bf16.msra.mxu0 0
    %1056 = vmatprep.subr.bf16.mxu0 0
    %1057 = vmatpush1.bf16.msra.mxu0 0
    %1058 = vmatprep.subr.bf16.mxu0 0
    %1059 = vmatpush1.bf16.msra.mxu0 0
    %1060 = vmatprep.mubr.bf16.mxu0 0
    %1061 = vmatmul.mubr.bf16.gmra.mrb[0].mxu0 %v1026
    %v1062 = vpop.f32.mrb[0].mxu0
    %v1063 = vadd.f32 %v1000, %v1062
    %v1064 = vpop.f32.mrb[0].mxu0
    %v1065 = vpop.f32.mrb[0].mxu0
    %v1066 = vadd.f32 %v1000, %v1065
    %v1067 = vpop.f32.mrb[0].mxu0
    %1068 = vdwg.mxu0
    %v1069 = vmax.f32 %v1063, 0.0
    %v1070 = vmax.f32 %v1066, 0.0
    %v1071 = vpack.c.bf16 %v1070, %v1069
    %v1072 = vlaneseq
    %v1073 = vshrl.u32 %v1072, 7
    %v1074 = vsub.s32 2, %v1073
    %v1075 = vrot.slane %v918, %v1074
    %v1084 = vunpack.c.l.b16 %v909
    %v1085 = vunpack.c.l.b16 %v910
    %v1086 = vunpack.c.l.b16 %v911
    %v1087 = vunpack.c.l.b16 %v912
    %v1088 = vunpack.c.l.b16 %v913
    %v1089 = vunpack.c.l.b16 %v914
    %v1090 = vunpack.c.l.b16 %v915
    %v1091 = vunpack.c.l.b16 %v916
    %v1092 = vpack.c.b16 %v1085, %v1084
    %v1093 = vpack.c.b16 %v1087, %v1086
    %v1094 = vpack.c.b16 %v1089, %v1088
    %v1095 = vpack.c.b16 %v1091, %v1090
    %v1101 = vsel %vm131, %v1071, 0
    %1103 = vmatprep.subr.bf16.mxu0 0
    %1104 = vmatpush1.bf16.msra.mxu0 %v1092
    %1105 = vmatprep.subr.bf16.mxu0 0
    %1106 = vmatpush1.bf16.msra.mxu0 %v1093
    %1107 = vmatprep.subr.bf16.mxu0 0
    %1108 = vmatpush1.bf16.msra.mxu0 %v1094
    %1109 = vmatprep.subr.bf16.mxu0 0
    %1110 = vmatpush1.bf16.msra.mxu0 %v1095
    %1111 = vmatprep.subr.bf16.mxu0 0
    %1112 = vmatpush1.bf16.msra.mxu0 0
    %1113 = vmatprep.subr.bf16.mxu0 0
    %1114 = vmatpush1.bf16.msra.mxu0 0
    %1115 = vmatprep.subr.bf16.mxu0 0
    %1116 = vmatpush1.bf16.msra.mxu0 0
    %1117 = vmatprep.subr.bf16.mxu0 0
    %1118 = vmatpush1.bf16.msra.mxu0 0
    %1119 = vmatprep.subr.bf16.mxu0 0
    %1120 = vmatpush1.bf16.msra.mxu0 0
    %1121 = vmatprep.subr.bf16.mxu0 0
    %1122 = vmatpush1.bf16.msra.mxu0 0
    %1123 = vmatprep.subr.bf16.mxu0 0
    %1124 = vmatpush1.bf16.msra.mxu0 0
    %1125 = vmatprep.subr.bf16.mxu0 0
    %1126 = vmatpush1.bf16.msra.mxu0 0
    %1127 = vmatprep.subr.bf16.mxu0 0
    %1128 = vmatpush1.bf16.msra.mxu0 0
    %1129 = vmatprep.subr.bf16.mxu0 0
    %1130 = vmatpush1.bf16.msra.mxu0 0
    %1131 = vmatprep.subr.bf16.mxu0 0
    %1132 = vmatpush1.bf16.msra.mxu0 0
    %1133 = vmatprep.subr.bf16.mxu0 0
    %1134 = vmatpush1.bf16.msra.mxu0 0
    %1135 = vmatprep.mubr.bf16.mxu0 0
    %1136 = vmatmul.mubr.bf16.gmra.mrb[0].mxu0 %v1101
    %v1137 = vpop.f32.mrb[0].mxu0
    %v1138 = vadd.f32 %v1075, %v1137
    %v1139 = vpop.f32.mrb[0].mxu0
    %v1140 = vpop.f32.mrb[0].mxu0
    %v1141 = vadd.f32 %v1075, %v1140
    %v1142 = vpop.f32.mrb[0].mxu0
    %1143 = vdwg.mxu0
    %v1144 = vpack.c.bf16 %v1141, %v1138
    %v1146 = vshrl.u32 %v919, 16
    %v1148 = vrot.slane %v1146, 1
    %v1150 = vsel %vm331, %v1148, 0
    %v1153 = vsel %vm331, %v1144, 0
    %1155 = vmatprep.subr.bf16.mxu0 0
    %1156 = vmatpush1.bf16.xpose.msra.mxu0 %v1153
    %1157 = vmatprep.subr.bf16.mxu0 0
    %1158 = vmatpush1.bf16.xpose.msra.mxu0 0
    %1159 = vmatprep.subr.bf16.mxu0 0
    %1160 = vmatpush1.bf16.xpose.msra.mxu0 0
    %1161 = vmatprep.subr.bf16.mxu0 0
    %1162 = vmatpush1.bf16.xpose.msra.mxu0 0
    %1163 = vmatprep.subr.bf16.mxu0 0
    %1164 = vmatpush1.bf16.xpose.msra.mxu0 0
    %1165 = vmatprep.subr.bf16.mxu0 0
    %1166 = vmatpush1.bf16.xpose.msra.mxu0 0
    %1167 = vmatprep.subr.bf16.mxu0 0
    %1168 = vmatpush1.bf16.xpose.msra.mxu0 0
    %1169 = vmatprep.subr.bf16.mxu0 0
    %1170 = vmatpush1.bf16.xpose.msra.mxu0 0
    %1171 = vmatprep.subr.bf16.mxu0 0
    %1172 = vmatpush1.bf16.xpose.msra.mxu0 0
    %1173 = vmatprep.subr.bf16.mxu0 0
    %1174 = vmatpush1.bf16.xpose.msra.mxu0 0
    %1175 = vmatprep.subr.bf16.mxu0 0
    %1176 = vmatpush1.bf16.xpose.msra.mxu0 0
    %1177 = vmatprep.subr.bf16.mxu0 0
    %1178 = vmatpush1.bf16.xpose.msra.mxu0 0
    %1179 = vmatprep.subr.bf16.mxu0 0
    %1180 = vmatpush1.bf16.xpose.msra.mxu0 0
    %1181 = vmatprep.subr.bf16.mxu0 0
    %1182 = vmatpush1.bf16.xpose.msra.mxu0 0
    %1183 = vmatprep.subr.bf16.mxu0 0
    %1184 = vmatpush1.bf16.xpose.msra.mxu0 0
    %1185 = vmatprep.subr.bf16.mxu0 0
    %1186 = vmatpush1.bf16.xpose.msra.mxu0 0
    %1187 = vmatprep.mubr.bf16.mxu0 0
    %1188 = vmatmul.mubr.bf16.gmra.mrb[0].mxu0 %v1150
    %v1189 = vpop.f32.mrb[0].mxu0
    %v1190 = vadd.f32 0.0, %v1189
    %v1191 = vpop.f32.mrb[0].mxu0
    %v1192 = vpop.f32.mrb[0].mxu0
    %v1193 = vpop.f32.mrb[0].mxu0
    %1194 = vdwg.mxu0
    %1196 = vset.pattern.permute.xlu0 64
    %1197 = vperm.xlu0 %1196, %v1138
    %v1198 = vpop.permute.xlu0 %1197
    %1201 = vset.pattern.permute.xlu0 64
    %1202 = vperm.xlu0 %1201, %v1141
    %v1203 = vpop.permute.xlu0 %1202
    %v1205 = vlaneseq
    %v1206 = vshrl.u32 %v1205, 7
    %v1207 = vsub.s32 0, %v1206
    %v1208 = vrot.slane %v1190, %v1207
    %v1209 = vadd.f32 %v1198, %v1208
    %v1210 = vadd.f32 %v1203, %v1208
    %v1211 = vstv %s920
    %v1212 = vmul.f32 %v394, %v1211
    %v1213 = vmul.f32 %v395, %v1211
    %v1214 = vadd.f32 %v1209, %v1212
    %v1215 = vadd.f32 %v1210, %v1213
    %v1216 = vmul.f32 %v1214, 0.2
    %v1217 = vmul.f32 %v1215, 0.2
    %v1218 = vmax.f32 %v1214, %v1216
    %v1219 = vmax.f32 %v1215, %v1217
    %v1220 = vadd.f32 %v1218, %v71
    %v1221 = vadd.f32 %v1219, %v72
    %v1222 = vsel %vm407, %v1220, -inf
    %1223 = vmax.xlane.f32.xlu0 %v1222
    %v1224 = vpop.xlane.xlu0 %1223
    %v1225 = vsel %vm407, %v1221, -inf
    %1226 = vmax.xlane.f32.xlu0 %v1225
    %v1227 = vpop.xlane.xlu0 %1226
    %v1228 = vmax.f32 %v1224, -1e+29
    %v1229 = vmax.f32 %v1227, -1e+29
    %v1230 = vsub.f32 %v1220, %v1228
    %v1231 = vsub.f32 %v1221, %v1229
    %v1232 = vmul.f32 %v1230, 1.442695
    %v1233 = vpow.pop %v1232
    %v1234 = vmul.f32 %v1231, 1.442695
    %v1235 = vpow.pop %v1234
    %v1236 = vpack.c.bf16 %v1235, %v1233
    %v1238 = vsel %vm407, %v1236, 0
    %1240 = vmatprep.subr.bf16.mxu0 0
    %1241 = vmatpush1.bf16.msra.mxu0 %v1144
    %1242 = vmatprep.subr.bf16.mxu0 0
    %1243 = vmatpush1.bf16.msra.mxu0 0
    %1244 = vmatprep.subr.bf16.mxu0 0
    %1245 = vmatpush1.bf16.msra.mxu0 0
    %1246 = vmatprep.subr.bf16.mxu0 0
    %1247 = vmatpush1.bf16.msra.mxu0 0
    %1248 = vmatprep.subr.bf16.mxu0 0
    %1249 = vmatpush1.bf16.msra.mxu0 0
    %1250 = vmatprep.subr.bf16.mxu0 0
    %1251 = vmatpush1.bf16.msra.mxu0 0
    %1252 = vmatprep.subr.bf16.mxu0 0
    %1253 = vmatpush1.bf16.msra.mxu0 0
    %1254 = vmatprep.subr.bf16.mxu0 0
    %1255 = vmatpush1.bf16.msra.mxu0 0
    %1256 = vmatprep.subr.bf16.mxu0 0
    %1257 = vmatpush1.bf16.msra.mxu0 0
    %1258 = vmatprep.subr.bf16.mxu0 0
    %1259 = vmatpush1.bf16.msra.mxu0 0
    %1260 = vmatprep.subr.bf16.mxu0 0
    %1261 = vmatpush1.bf16.msra.mxu0 0
    %1262 = vmatprep.subr.bf16.mxu0 0
    %1263 = vmatpush1.bf16.msra.mxu0 0
    %1264 = vmatprep.subr.bf16.mxu0 0
    %1265 = vmatpush1.bf16.msra.mxu0 0
    %1266 = vmatprep.subr.bf16.mxu0 0
    %1267 = vmatpush1.bf16.msra.mxu0 0
    %1268 = vmatprep.subr.bf16.mxu0 0
    %1269 = vmatpush1.bf16.msra.mxu0 0
    %1270 = vmatprep.subr.bf16.mxu0 0
    %1271 = vmatpush1.bf16.msra.mxu0 0
    %1272 = vmatprep.mubr.bf16.mxu0 0
    %1273 = vmatmul.mubr.bf16.gmra.mrb[0].mxu0 %v1238
    %v1274 = vpop.f32.mrb[0].mxu0
    %v1275 = vadd.f32 0.0, %v1274
    %v1276 = vpop.f32.mrb[0].mxu0
    %v1277 = vpop.f32.mrb[0].mxu0
    %v1278 = vadd.f32 0.0, %v1277
    %v1279 = vpop.f32.mrb[0].mxu0
    %1280 = vdwg.mxu0
    %v1281 = vmax.f32 %v1275, 1e-16
    %v1282 = vmax.f32 %v1278, 1e-16
    %v1283 = vrcp.pop %v1281
    %v1284 = vrcp.pop %v1282
    %1286 = vset.pattern.permute.xlu0 65
    %1287 = vperm.xlu0 %1286, %v1283
    %v1288 = vpop.permute.xlu0 %1287
    %1291 = vset.pattern.permute.xlu0 65
    %1292 = vperm.xlu0 %1291, %v1284
    %v1293 = vpop.permute.xlu0 %1292
    %v1295 = vmul.f32 %v1275, %v1288
    %v1296 = vmul.f32 %v1278, %v1293
    %s1297 = scalar_lea.vmem %s5, 96
    %v1298 = vld [vmem:[%s1297] sm:$0xf]
    %v1299 = vld [vmem:[%s1297 + $0x4] sm:$0xf]
    %v1300 = vld [vmem:[%s1297 + $0x8] sm:$0xf]
    %v1301 = vld [vmem:[%s1297 + $0xc] sm:$0xf]
    %v1302 = vld [vmem:[%s1297 + $0x10] sm:$0xf]
    %v1303 = vld [vmem:[%s1297 + $0x14] sm:$0xf]
    %v1304 = vld [vmem:[%s1297 + $0x18] sm:$0xf]
    %v1305 = vld [vmem:[%s1297 + $0x1c] sm:$0xf]
    %s1306 = scalar_lea.vmem %s6, 96
    %v1307 = vld [vmem:[%s1306] sm:$0xf]
    %v1308 = vld [vmem:[%s1306 + $0x4] sm:$0xf]
    %v1309 = vld [vmem:[%s1306 + $0x8] sm:$0xf]
    %v1310 = vld [vmem:[%s1306 + $0xc] sm:$0xf]
    %v1311 = vld [vmem:[%s1306 + $0x10] sm:$0xf]
    %v1312 = vld [vmem:[%s1306 + $0x14] sm:$0xf]
    %v1313 = vld [vmem:[%s1306 + $0x18] sm:$0xf]
    %v1314 = vld [vmem:[%s1306 + $0x1c] sm:$0xf]
    %s1315 = scalar_lea.vmem %s7, 96
    %v1316 = vld [vmem:[%s1315] sm:$0xf]
    %v1317 = vld [vmem:[%s1315 + $0x4] sm:$0xf]
    %v1318 = vld [vmem:[%s1315 + $0x8] sm:$0xf]
    %v1319 = vld [vmem:[%s1315 + $0xc] sm:$0xf]
    %v1320 = vld [vmem:[%s1315 + $0x10] sm:$0xf]
    %v1321 = vld [vmem:[%s1315 + $0x14] sm:$0xf]
    %v1322 = vld [vmem:[%s1315 + $0x18] sm:$0xf]
    %v1323 = vld [vmem:[%s1315 + $0x1c] sm:$0xf]
    %s1324 = scalar_lea.vmem %s8, 12
    %v1325 = vld [vmem:[%s1324] sm:$0xf]
    %v1326 = vpack.c.bf16 %v1325, %v1325
    %s1327 = sld [smem:[#allocation3 + $0x3]]
    %v1328 = vpack.c.bf16 %v1296, %v1295
    %v1329 = vlaneseq
    %v1330 = vshrl.u32 %v1329, 7
    %v1331 = vsub.s32 0, %v1330
    %v1332 = vrot.slane %v1325, %v1331
    %v1341 = vunpack.c.l.b16 %v1298
    %v1342 = vunpack.c.l.b16 %v1299
    %v1343 = vunpack.c.l.b16 %v1300
    %v1344 = vunpack.c.l.b16 %v1301
    %v1345 = vunpack.c.l.b16 %v1302
    %v1346 = vunpack.c.l.b16 %v1303
    %v1347 = vunpack.c.l.b16 %v1304
    %v1348 = vunpack.c.l.b16 %v1305
    %v1349 = vpack.c.b16 %v1342, %v1341
    %v1350 = vpack.c.b16 %v1344, %v1343
    %v1351 = vpack.c.b16 %v1346, %v1345
    %v1352 = vpack.c.b16 %v1348, %v1347
    %v1358 = vsel %vm131, %v1328, 0
    %1360 = vmatprep.subr.bf16.mxu0 0
    %1361 = vmatpush1.bf16.msra.mxu0 %v1349
    %1362 = vmatprep.subr.bf16.mxu0 0
    %1363 = vmatpush1.bf16.msra.mxu0 %v1350
    %1364 = vmatprep.subr.bf16.mxu0 0
    %1365 = vmatpush1.bf16.msra.mxu0 %v1351
    %1366 = vmatprep.subr.bf16.mxu0 0
    %1367 = vmatpush1.bf16.msra.mxu0 %v1352
    %1368 = vmatprep.subr.bf16.mxu0 0
    %1369 = vmatpush1.bf16.msra.mxu0 0
    %1370 = vmatprep.subr.bf16.mxu0 0
    %1371 = vmatpush1.bf16.msra.mxu0 0
    %1372 = vmatprep.subr.bf16.mxu0 0
    %1373 = vmatpush1.bf16.msra.mxu0 0
    %1374 = vmatprep.subr.bf16.mxu0 0
    %1375 = vmatpush1.bf16.msra.mxu0 0
    %1376 = vmatprep.subr.bf16.mxu0 0
    %1377 = vmatpush1.bf16.msra.mxu0 0
    %1378 = vmatprep.subr.bf16.mxu0 0
    %1379 = vmatpush1.bf16.msra.mxu0 0
    %1380 = vmatprep.subr.bf16.mxu0 0
    %1381 = vmatpush1.bf16.msra.mxu0 0
    %1382 = vmatprep.subr.bf16.mxu0 0
    %1383 = vmatpush1.bf16.msra.mxu0 0
    %1384 = vmatprep.subr.bf16.mxu0 0
    %1385 = vmatpush1.bf16.msra.mxu0 0
    %1386 = vmatprep.subr.bf16.mxu0 0
    %1387 = vmatpush1.bf16.msra.mxu0 0
    %1388 = vmatprep.subr.bf16.mxu0 0
    %1389 = vmatpush1.bf16.msra.mxu0 0
    %1390 = vmatprep.subr.bf16.mxu0 0
    %1391 = vmatpush1.bf16.msra.mxu0 0
    %1392 = vmatprep.mubr.bf16.mxu0 0
    %1393 = vmatmul.mubr.bf16.gmra.mrb[0].mxu0 %v1358
    %v1394 = vpop.f32.mrb[0].mxu0
    %v1395 = vadd.f32 %v1332, %v1394
    %v1396 = vpop.f32.mrb[0].mxu0
    %v1397 = vpop.f32.mrb[0].mxu0
    %v1398 = vadd.f32 %v1332, %v1397
    %v1399 = vpop.f32.mrb[0].mxu0
    %1400 = vdwg.mxu0
    %v1401 = vmax.f32 %v1395, 0.0
    %v1402 = vmax.f32 %v1398, 0.0
    %v1403 = vpack.c.bf16 %v1402, %v1401
    %v1404 = vlaneseq
    %v1405 = vshrl.u32 %v1404, 7
    %v1406 = vsub.s32 1, %v1405
    %v1407 = vrot.slane %v1325, %v1406
    %v1416 = vunpack.c.l.b16 %v1307
    %v1417 = vunpack.c.l.b16 %v1308
    %v1418 = vunpack.c.l.b16 %v1309
    %v1419 = vunpack.c.l.b16 %v1310
    %v1420 = vunpack.c.l.b16 %v1311
    %v1421 = vunpack.c.l.b16 %v1312
    %v1422 = vunpack.c.l.b16 %v1313
    %v1423 = vunpack.c.l.b16 %v1314
    %v1424 = vpack.c.b16 %v1417, %v1416
    %v1425 = vpack.c.b16 %v1419, %v1418
    %v1426 = vpack.c.b16 %v1421, %v1420
    %v1427 = vpack.c.b16 %v1423, %v1422
    %v1433 = vsel %vm131, %v1403, 0
    %1435 = vmatprep.subr.bf16.mxu0 0
    %1436 = vmatpush1.bf16.msra.mxu0 %v1424
    %1437 = vmatprep.subr.bf16.mxu0 0
    %1438 = vmatpush1.bf16.msra.mxu0 %v1425
    %1439 = vmatprep.subr.bf16.mxu0 0
    %1440 = vmatpush1.bf16.msra.mxu0 %v1426
    %1441 = vmatprep.subr.bf16.mxu0 0
    %1442 = vmatpush1.bf16.msra.mxu0 %v1427
    %1443 = vmatprep.subr.bf16.mxu0 0
    %1444 = vmatpush1.bf16.msra.mxu0 0
    %1445 = vmatprep.subr.bf16.mxu0 0
    %1446 = vmatpush1.bf16.msra.mxu0 0
    %1447 = vmatprep.subr.bf16.mxu0 0
    %1448 = vmatpush1.bf16.msra.mxu0 0
    %1449 = vmatprep.subr.bf16.mxu0 0
    %1450 = vmatpush1.bf16.msra.mxu0 0
    %1451 = vmatprep.subr.bf16.mxu0 0
    %1452 = vmatpush1.bf16.msra.mxu0 0
    %1453 = vmatprep.subr.bf16.mxu0 0
    %1454 = vmatpush1.bf16.msra.mxu0 0
    %1455 = vmatprep.subr.bf16.mxu0 0
    %1456 = vmatpush1.bf16.msra.mxu0 0
    %1457 = vmatprep.subr.bf16.mxu0 0
    %1458 = vmatpush1.bf16.msra.mxu0 0
    %1459 = vmatprep.subr.bf16.mxu0 0
    %1460 = vmatpush1.bf16.msra.mxu0 0
    %1461 = vmatprep.subr.bf16.mxu0 0
    %1462 = vmatpush1.bf16.msra.mxu0 0
    %1463 = vmatprep.subr.bf16.mxu0 0
    %1464 = vmatpush1.bf16.msra.mxu0 0
    %1465 = vmatprep.subr.bf16.mxu0 0
    %1466 = vmatpush1.bf16.msra.mxu0 0
    %1467 = vmatprep.mubr.bf16.mxu0 0
    %1468 = vmatmul.mubr.bf16.gmra.mrb[0].mxu0 %v1433
    %v1469 = vpop.f32.mrb[0].mxu0
    %v1470 = vadd.f32 %v1407, %v1469
    %v1471 = vpop.f32.mrb[0].mxu0
    %v1472 = vpop.f32.mrb[0].mxu0
    %v1473 = vadd.f32 %v1407, %v1472
    %v1474 = vpop.f32.mrb[0].mxu0
    %1475 = vdwg.mxu0
    %v1476 = vmax.f32 %v1470, 0.0
    %v1477 = vmax.f32 %v1473, 0.0
    %v1478 = vpack.c.bf16 %v1477, %v1476
    %v1479 = vlaneseq
    %v1480 = vshrl.u32 %v1479, 7
    %v1481 = vsub.s32 2, %v1480
    %v1482 = vrot.slane %v1325, %v1481
    %v1491 = vunpack.c.l.b16 %v1316
    %v1492 = vunpack.c.l.b16 %v1317
    %v1493 = vunpack.c.l.b16 %v1318
    %v1494 = vunpack.c.l.b16 %v1319
    %v1495 = vunpack.c.l.b16 %v1320
    %v1496 = vunpack.c.l.b16 %v1321
    %v1497 = vunpack.c.l.b16 %v1322
    %v1498 = vunpack.c.l.b16 %v1323
    %v1499 = vpack.c.b16 %v1492, %v1491
    %v1500 = vpack.c.b16 %v1494, %v1493
    %v1501 = vpack.c.b16 %v1496, %v1495
    %v1502 = vpack.c.b16 %v1498, %v1497
    %v1508 = vsel %vm131, %v1478, 0
    %1510 = vmatprep.subr.bf16.mxu0 0
    %1511 = vmatpush1.bf16.msra.mxu0 %v1499
    %1512 = vmatprep.subr.bf16.mxu0 0
    %1513 = vmatpush1.bf16.msra.mxu0 %v1500
    %1514 = vmatprep.subr.bf16.mxu0 0
    %1515 = vmatpush1.bf16.msra.mxu0 %v1501
    %1516 = vmatprep.subr.bf16.mxu0 0
    %1517 = vmatpush1.bf16.msra.mxu0 %v1502
    %1518 = vmatprep.subr.bf16.mxu0 0
    %1519 = vmatpush1.bf16.msra.mxu0 0
    %1520 = vmatprep.subr.bf16.mxu0 0
    %1521 = vmatpush1.bf16.msra.mxu0 0
    %1522 = vmatprep.subr.bf16.mxu0 0
    %1523 = vmatpush1.bf16.msra.mxu0 0
    %1524 = vmatprep.subr.bf16.mxu0 0
    %1525 = vmatpush1.bf16.msra.mxu0 0
    %1526 = vmatprep.subr.bf16.mxu0 0
    %1527 = vmatpush1.bf16.msra.mxu0 0
    %1528 = vmatprep.subr.bf16.mxu0 0
    %1529 = vmatpush1.bf16.msra.mxu0 0
    %1530 = vmatprep.subr.bf16.mxu0 0
    %1531 = vmatpush1.bf16.msra.mxu0 0
    %1532 = vmatprep.subr.bf16.mxu0 0
    %1533 = vmatpush1.bf16.msra.mxu0 0
    %1534 = vmatprep.subr.bf16.mxu0 0
    %1535 = vmatpush1.bf16.msra.mxu0 0
    %1536 = vmatprep.subr.bf16.mxu0 0
    %1537 = vmatpush1.bf16.msra.mxu0 0
    %1538 = vmatprep.subr.bf16.mxu0 0
    %1539 = vmatpush1.bf16.msra.mxu0 0
    %1540 = vmatprep.subr.bf16.mxu0 0
    %1541 = vmatpush1.bf16.msra.mxu0 0
    %1542 = vmatprep.mubr.bf16.mxu0 0
    %1543 = vmatmul.mubr.bf16.gmra.mrb[0].mxu0 %v1508
    %v1544 = vpop.f32.mrb[0].mxu0
    %v1545 = vadd.f32 %v1482, %v1544
    %v1546 = vpop.f32.mrb[0].mxu0
    %v1547 = vpop.f32.mrb[0].mxu0
    %v1548 = vadd.f32 %v1482, %v1547
    %v1549 = vpop.f32.mrb[0].mxu0
    %1550 = vdwg.mxu0
    %v1551 = vpack.c.bf16 %v1548, %v1545
    %v1553 = vshrl.u32 %v1326, 16
    %v1555 = vrot.slane %v1553, 1
    %v1557 = vsel %vm331, %v1555, 0
    %v1560 = vsel %vm331, %v1551, 0
    %1562 = vmatprep.subr.bf16.mxu0 0
    %1563 = vmatpush1.bf16.xpose.msra.mxu0 %v1560
    %1564 = vmatprep.subr.bf16.mxu0 0
    %1565 = vmatpush1.bf16.xpose.msra.mxu0 0
    %1566 = vmatprep.subr.bf16.mxu0 0
    %1567 = vmatpush1.bf16.xpose.msra.mxu0 0
    %1568 = vmatprep.subr.bf16.mxu0 0
    %1569 = vmatpush1.bf16.xpose.msra.mxu0 0
    %1570 = vmatprep.subr.bf16.mxu0 0
    %1571 = vmatpush1.bf16.xpose.msra.mxu0 0
    %1572 = vmatprep.subr.bf16.mxu0 0
    %1573 = vmatpush1.bf16.xpose.msra.mxu0 0
    %1574 = vmatprep.subr.bf16.mxu0 0
    %1575 = vmatpush1.bf16.xpose.msra.mxu0 0
    %1576 = vmatprep.subr.bf16.mxu0 0
    %1577 = vmatpush1.bf16.xpose.msra.mxu0 0
    %1578 = vmatprep.subr.bf16.mxu0 0
    %1579 = vmatpush1.bf16.xpose.msra.mxu0 0
    %1580 = vmatprep.subr.bf16.mxu0 0
    %1581 = vmatpush1.bf16.xpose.msra.mxu0 0
    %1582 = vmatprep.subr.bf16.mxu0 0
    %1583 = vmatpush1.bf16.xpose.msra.mxu0 0
    %1584 = vmatprep.subr.bf16.mxu0 0
    %1585 = vmatpush1.bf16.xpose.msra.mxu0 0
    %1586 = vmatprep.subr.bf16.mxu0 0
    %1587 = vmatpush1.bf16.xpose.msra.mxu0 0
    %1588 = vmatprep.subr.bf16.mxu0 0
    %1589 = vmatpush1.bf16.xpose.msra.mxu0 0
    %1590 = vmatprep.subr.bf16.mxu0 0
    %1591 = vmatpush1.bf16.xpose.msra.mxu0 0
    %1592 = vmatprep.subr.bf16.mxu0 0
    %1593 = vmatpush1.bf16.xpose.msra.mxu0 0
    %1594 = vmatprep.mubr.bf16.mxu0 0
    %1595 = vmatmul.mubr.bf16.gmra.mrb[0].mxu0 %v1557
    %v1596 = vpop.f32.mrb[0].mxu0
    %v1597 = vadd.f32 0.0, %v1596
    %v1598 = vpop.f32.mrb[0].mxu0
    %v1599 = vpop.f32.mrb[0].mxu0
    %v1600 = vpop.f32.mrb[0].mxu0
    %1601 = vdwg.mxu0
    %1603 = vset.pattern.permute.xlu0 64
    %1604 = vperm.xlu0 %1603, %v1545
    %v1605 = vpop.permute.xlu0 %1604
    %1608 = vset.pattern.permute.xlu0 64
    %1609 = vperm.xlu0 %1608, %v1548
    %v1610 = vpop.permute.xlu0 %1609
    %v1612 = vlaneseq
    %v1613 = vshrl.u32 %v1612, 7
    %v1614 = vsub.s32 0, %v1613
    %v1615 = vrot.slane %v1597, %v1614
    %v1616 = vadd.f32 %v1605, %v1615
    %v1617 = vadd.f32 %v1610, %v1615
    %v1618 = vstv %s1327
    %v1619 = vmul.f32 %v394, %v1618
    %v1620 = vmul.f32 %v395, %v1618
    %v1621 = vadd.f32 %v1616, %v1619
    %v1622 = vadd.f32 %v1617, %v1620
    %v1623 = vmul.f32 %v1621, 0.2
    %v1624 = vmul.f32 %v1622, 0.2
    %v1625 = vmax.f32 %v1621, %v1623
    %v1626 = vmax.f32 %v1622, %v1624
    %v1627 = vadd.f32 %v1625, %v71
    %v1628 = vadd.f32 %v1626, %v72
    %v1629 = vsel %vm407, %v1627, -inf
    %1630 = vmax.xlane.f32.xlu0 %v1629
    %v1631 = vpop.xlane.xlu0 %1630
    %v1632 = vsel %vm407, %v1628, -inf
    %1633 = vmax.xlane.f32.xlu0 %v1632
    %v1634 = vpop.xlane.xlu0 %1633
    %v1635 = vmax.f32 %v1631, -1e+29
    %v1636 = vmax.f32 %v1634, -1e+29
    %v1637 = vsub.f32 %v1627, %v1635
    %v1638 = vsub.f32 %v1628, %v1636
    %v1639 = vmul.f32 %v1637, 1.442695
    %v1640 = vpow.pop %v1639
    %v1641 = vmul.f32 %v1638, 1.442695
    %v1642 = vpow.pop %v1641
    %v1643 = vpack.c.bf16 %v1642, %v1640
    %v1645 = vsel %vm407, %v1643, 0
    %1647 = vmatprep.subr.bf16.mxu0 0
    %1648 = vmatpush1.bf16.msra.mxu0 %v1551
    %1649 = vmatprep.subr.bf16.mxu0 0
    %1650 = vmatpush1.bf16.msra.mxu0 0
    %1651 = vmatprep.subr.bf16.mxu0 0
    %1652 = vmatpush1.bf16.msra.mxu0 0
    %1653 = vmatprep.subr.bf16.mxu0 0
    %1654 = vmatpush1.bf16.msra.mxu0 0
    %1655 = vmatprep.subr.bf16.mxu0 0
    %1656 = vmatpush1.bf16.msra.mxu0 0
    %1657 = vmatprep.subr.bf16.mxu0 0
    %1658 = vmatpush1.bf16.msra.mxu0 0
    %1659 = vmatprep.subr.bf16.mxu0 0
    %1660 = vmatpush1.bf16.msra.mxu0 0
    %1661 = vmatprep.subr.bf16.mxu0 0
    %1662 = vmatpush1.bf16.msra.mxu0 0
    %1663 = vmatprep.subr.bf16.mxu0 0
    %1664 = vmatpush1.bf16.msra.mxu0 0
    %1665 = vmatprep.subr.bf16.mxu0 0
    %1666 = vmatpush1.bf16.msra.mxu0 0
    %1667 = vmatprep.subr.bf16.mxu0 0
    %1668 = vmatpush1.bf16.msra.mxu0 0
    %1669 = vmatprep.subr.bf16.mxu0 0
    %1670 = vmatpush1.bf16.msra.mxu0 0
    %1671 = vmatprep.subr.bf16.mxu0 0
    %1672 = vmatpush1.bf16.msra.mxu0 0
    %1673 = vmatprep.subr.bf16.mxu0 0
    %1674 = vmatpush1.bf16.msra.mxu0 0
    %1675 = vmatprep.subr.bf16.mxu0 0
    %1676 = vmatpush1.bf16.msra.mxu0 0
    %1677 = vmatprep.subr.bf16.mxu0 0
    %1678 = vmatpush1.bf16.msra.mxu0 0
    %1679 = vmatprep.mubr.bf16.mxu0 0
    %1680 = vmatmul.mubr.bf16.gmra.mrb[0].mxu0 %v1645
    %v1681 = vpop.f32.mrb[0].mxu0
    %v1682 = vadd.f32 0.0, %v1681
    %v1683 = vpop.f32.mrb[0].mxu0
    %v1684 = vpop.f32.mrb[0].mxu0
    %v1685 = vadd.f32 0.0, %v1684
    %v1686 = vpop.f32.mrb[0].mxu0
    %1687 = vdwg.mxu0
    %v1688 = vmax.f32 %v1682, 1e-16
    %v1689 = vmax.f32 %v1685, 1e-16
    %v1690 = vrcp.pop %v1688
    %v1691 = vrcp.pop %v1689
    %1693 = vset.pattern.permute.xlu0 65
    %1694 = vperm.xlu0 %1693, %v1690
    %v1695 = vpop.permute.xlu0 %1694
    %1698 = vset.pattern.permute.xlu0 65
    %1699 = vperm.xlu0 %1698, %v1691
    %v1700 = vpop.permute.xlu0 %1699
    %v1702 = vmul.f32 %v1682, %v1695
    %v1703 = vmul.f32 %v1685, %v1700
    %v1704 = vld [vmem:[%s4] sm:$0x3]
    %v1705 = vld [vmem:[%s10] sm:$0x3]
    %s1706 = sld [smem:[#allocation3 + $0x4]]
    %v1707 = vpack.c.bf16 %v1703, %v1702
    %v1708 = vld [vmem:[%s9] sm:$0xf]
    %v1709 = vld [vmem:[%s9 + $0x4] sm:$0xf]
    %v1710 = vld [vmem:[%s9 + $0x8] sm:$0xf]
    %v1711 = vld [vmem:[%s9 + $0xc] sm:$0xf]
    %v1712 = vld [vmem:[%s9 + $0x10] sm:$0xf]
    %v1713 = vld [vmem:[%s9 + $0x14] sm:$0xf]
    %v1714 = vld [vmem:[%s9 + $0x18] sm:$0xf]
    %v1715 = vld [vmem:[%s9 + $0x1c] sm:$0xf]
    %v1716 = vlaneseq
    %v1717 = vshrl.u32 %v1716, 7
    %v1718 = vsub.s32 0, %v1717
    %v1719 = vrot.slane %v1705, %v1718
    %v1728 = vunpack.c.l.b16 %v1708
    %v1729 = vunpack.c.l.b16 %v1709
    %v1730 = vunpack.c.l.b16 %v1710
    %v1731 = vunpack.c.l.b16 %v1711
    %v1732 = vunpack.c.l.b16 %v1712
    %v1733 = vunpack.c.l.b16 %v1713
    %v1734 = vunpack.c.l.b16 %v1714
    %v1735 = vunpack.c.l.b16 %v1715
    %v1736 = vpack.c.b16 %v1729, %v1728
    %v1737 = vpack.c.b16 %v1731, %v1730
    %v1738 = vpack.c.b16 %v1733, %v1732
    %v1739 = vpack.c.b16 %v1735, %v1734
    %v1745 = vsel %vm131, %v1707, 0
    %1747 = vmatprep.subr.bf16.mxu0 0
    %1748 = vmatpush1.bf16.msra.mxu0 %v1736
    %1749 = vmatprep.subr.bf16.mxu0 0
    %1750 = vmatpush1.bf16.msra.mxu0 %v1737
    %1751 = vmatprep.subr.bf16.mxu0 0
    %1752 = vmatpush1.bf16.msra.mxu0 %v1738
    %1753 = vmatprep.subr.bf16.mxu0 0
    %1754 = vmatpush1.bf16.msra.mxu0 %v1739
    %1755 = vmatprep.subr.bf16.mxu0 0
    %1756 = vmatpush1.bf16.msra.mxu0 0
    %1757 = vmatprep.subr.bf16.mxu0 0
    %1758 = vmatpush1.bf16.msra.mxu0 0
    %1759 = vmatprep.subr.bf16.mxu0 0
    %1760 = vmatpush1.bf16.msra.mxu0 0
    %1761 = vmatprep.subr.bf16.mxu0 0
    %1762 = vmatpush1.bf16.msra.mxu0 0
    %1763 = vmatprep.subr.bf16.mxu0 0
    %1764 = vmatpush1.bf16.msra.mxu0 0
    %1765 = vmatprep.subr.bf16.mxu0 0
    %1766 = vmatpush1.bf16.msra.mxu0 0
    %1767 = vmatprep.subr.bf16.mxu0 0
    %1768 = vmatpush1.bf16.msra.mxu0 0
    %1769 = vmatprep.subr.bf16.mxu0 0
    %1770 = vmatpush1.bf16.msra.mxu0 0
    %1771 = vmatprep.subr.bf16.mxu0 0
    %1772 = vmatpush1.bf16.msra.mxu0 0
    %1773 = vmatprep.subr.bf16.mxu0 0
    %1774 = vmatpush1.bf16.msra.mxu0 0
    %1775 = vmatprep.subr.bf16.mxu0 0
    %1776 = vmatpush1.bf16.msra.mxu0 0
    %1777 = vmatprep.subr.bf16.mxu0 0
    %1778 = vmatpush1.bf16.msra.mxu0 0
    %1779 = vmatprep.mubr.bf16.mxu0 0
    %1780 = vmatmul.mubr.bf16.gmra.mrb[0].mxu0 %v1745
    %v1781 = vpop.f32.mrb[0].mxu0
    %v1782 = vadd.f32 %v1719, %v1781
    %v1783 = vpop.f32.mrb[0].mxu0
    %v1784 = vpop.f32.mrb[0].mxu0
    %v1785 = vadd.f32 %v1719, %v1784
    %v1786 = vpop.f32.mrb[0].mxu0
    %1787 = vdwg.mxu0
    %v1788 = vtanh.pop %v1782
    %v1789 = vtanh.pop %v1785
    %v1790 = vstv %s1706
    %v1792 = vrot.slane %v1705, 1
    %1794 = vmatprep.subr.mxu0 0.0
    %1795 = vmatpush1.xpose.msra.mxu0 %v1788
    %1796 = vmatprep.subr.mxu0 0.0
    %1797 = vmatpush1.xpose.msra.mxu0 %v1789
    %1798 = vmatprep.subr.mxu0 0.0
    %1799 = vmatpush1.xpose.msra.mxu0 0.0
    %1800 = vmatprep.subr.mxu0 0.0
    %1801 = vmatpush1.xpose.msra.mxu0 0.0
    %1802 = vmatprep.subr.mxu0 0.0
    %1803 = vmatpush1.xpose.msra.mxu0 0.0
    %1804 = vmatprep.subr.mxu0 0.0
    %1805 = vmatpush1.xpose.msra.mxu0 0.0
    %1806 = vmatprep.subr.mxu0 0.0
    %1807 = vmatpush1.xpose.msra.mxu0 0.0
    %1808 = vmatprep.subr.mxu0 0.0
    %1809 = vmatpush1.xpose.msra.mxu0 0.0
    %1810 = vmatprep.subr.mxu0 0.0
    %1811 = vmatpush1.xpose.msra.mxu0 0.0
    %1812 = vmatprep.subr.mxu0 0.0
    %1813 = vmatpush1.xpose.msra.mxu0 0.0
    %1814 = vmatprep.subr.mxu0 0.0
    %1815 = vmatpush1.xpose.msra.mxu0 0.0
    %1816 = vmatprep.subr.mxu0 0.0
    %1817 = vmatpush1.xpose.msra.mxu0 0.0
    %1818 = vmatprep.subr.mxu0 0.0
    %1819 = vmatpush1.xpose.msra.mxu0 0.0
    %1820 = vmatprep.subr.mxu0 0.0
    %1821 = vmatpush1.xpose.msra.mxu0 0.0
    %1822 = vmatprep.subr.mxu0 0.0
    %1823 = vmatpush1.xpose.msra.mxu0 0.0
    %1824 = vmatprep.subr.mxu0 0.0
    %1825 = vmatpush1.xpose.msra.mxu0 0.0
    %1826 = vmatprep.subr.mxu0 0.0
    %1827 = vmatpush1.xpose.msra.mxu0 0.0
    %1828 = vmatprep.subr.mxu0 0.0
    %1829 = vmatpush1.xpose.msra.mxu0 0.0
    %1830 = vmatprep.subr.mxu0 0.0
    %1831 = vmatpush1.xpose.msra.mxu0 0.0
    %1832 = vmatprep.subr.mxu0 0.0
    %1833 = vmatpush1.xpose.msra.mxu0 0.0
    %1834 = vmatprep.subr.mxu0 0.0
    %1835 = vmatpush1.xpose.msra.mxu0 0.0
    %1836 = vmatprep.subr.mxu0 0.0
    %1837 = vmatpush1.xpose.msra.mxu0 0.0
    %1838 = vmatprep.subr.mxu0 0.0
    %1839 = vmatpush1.xpose.msra.mxu0 0.0
    %1840 = vmatprep.subr.mxu0 0.0
    %1841 = vmatpush1.xpose.msra.mxu0 0.0
    %1842 = vmatprep.subr.mxu0 0.0
    %1843 = vmatpush1.xpose.msra.mxu0 0.0
    %1844 = vmatprep.subr.mxu0 0.0
    %1845 = vmatpush1.xpose.msra.mxu0 0.0
    %1846 = vmatprep.subr.mxu0 0.0
    %1847 = vmatpush1.xpose.msra.mxu0 0.0
    %1848 = vmatprep.subr.mxu0 0.0
    %1849 = vmatpush1.xpose.msra.mxu0 0.0
    %1850 = vmatprep.subr.mxu0 0.0
    %1851 = vmatpush1.xpose.msra.mxu0 0.0
    %1852 = vmatprep.subr.mxu0 0.0
    %1853 = vmatpush1.xpose.msra.mxu0 0.0
    %1854 = vmatprep.subr.mxu0 0.0
    %1855 = vmatpush1.xpose.msra.mxu0 0.0
    %1856 = vmatprep.subr.mxu0 0.0
    %1857 = vmatpush1.xpose.msra.mxu0 0.0
    %1858 = vmatprep.mubr.f32.mxu0 0.0
    %1859 = vmatmul.mubr.f32.gmra.mrb[0].mxu0 %v1792
    %v1860 = vpop.f32.mrb[0].mxu0
    %v1861 = vadd.f32 %v1790, %v1860
    %v1862 = vpop.f32.mrb[0].mxu0
    %1863 = vdwg.mxu0
    %vm1864 = vcmp.gt.f32.partialorder %v1704, 0.0
    %v1865 = vlaneseq
    %v1866 = vshrl.u32 %v1865, 7
    %v1867 = vsub.s32 0, %v1866
    %v1868 = vrot.slane %v1861, %v1867
    %v1869 = vsel %vm1864, %v1868, -1e+30
    %vm1870 = vcmask 123904
    %v1871 = vsel %vm1870, %v1869, -inf
    %1872 = vmax.xlane.f32.xlu0 %v1871
    %v1873 = vpop.xlane.xlu0 %1872
    %1874 = vxpose.xlu0.b32.start [1/16] %v1873, 128
    %1875 = vxpose.xlu0.b32.cont [2/16] 0.0, 128
    %1876 = vxpose.xlu0.b32.cont [3/16] 0.0, 128
    %1877 = vxpose.xlu0.b32.cont [4/16] 0.0, 128
    %1878 = vxpose.xlu0.b32.cont [5/16] 0.0, 128
    %1879 = vxpose.xlu0.b32.cont [6/16] 0.0, 128
    %1880 = vxpose.xlu0.b32.cont [7/16] 0.0, 128
    %1881 = vxpose.xlu0.b32.cont [8/16] 0.0, 128
    %1882 = vxpose.xlu0.b32.cont [9/16] 0.0, 128
    %1883 = vxpose.xlu0.b32.cont [10/16] 0.0, 128
    %1884 = vxpose.xlu0.b32.cont [11/16] 0.0, 128
    %1885 = vxpose.xlu0.b32.cont [12/16] 0.0, 128
    %1886 = vxpose.xlu0.b32.cont [13/16] 0.0, 128
    %1887 = vxpose.xlu0.b32.cont [14/16] 0.0, 128
    %1888 = vxpose.xlu0.b32.cont [15/16] 0.0, 128
    %1889 = vxpose.xlu0.b32.end [16/16] 0.0, 128
    %v1890 = vpop.trf.xlu0
    %v1891 = vpop.trf.xlu0
    %v1892 = vpop.trf.xlu0
    %v1893 = vpop.trf.xlu0
    %v1894 = vpop.trf.xlu0
    %v1895 = vpop.trf.xlu0
    %v1896 = vpop.trf.xlu0
    %v1897 = vpop.trf.xlu0
    %v1898 = vpop.trf.xlu0
    %v1899 = vpop.trf.xlu0
    %v1900 = vpop.trf.xlu0
    %v1901 = vpop.trf.xlu0
    %v1902 = vpop.trf.xlu0
    %v1903 = vpop.trf.xlu0
    %v1904 = vpop.trf.xlu0
    %v1905 = vpop.trf.xlu0
    %vm1906 = vcmask 15360
    %v1908 = vsel %vm1906, %v1890, 0
    %vm1910 = vcmask 1041408
    %v1912 = vsel %vm1910, %v1704, 0
    %1914 = vmatprep.subr.mxu0 0.0
    %1915 = vmatpush1.msra.mxu0 %v1912
    %1916 = vmatprep.subr.mxu0 0.0
    %1917 = vmatpush1.msra.mxu0 0.0
    %1918 = vmatprep.subr.mxu0 0.0
    %1919 = vmatpush1.msra.mxu0 0.0
    %1920 = vmatprep.subr.mxu0 0.0
    %1921 = vmatpush1.msra.mxu0 0.0
    %1922 = vmatprep.subr.mxu0 0.0
    %1923 = vmatpush1.msra.mxu0 0.0
    %1924 = vmatprep.subr.mxu0 0.0
    %1925 = vmatpush1.msra.mxu0 0.0
    %1926 = vmatprep.subr.mxu0 0.0
    %1927 = vmatpush1.msra.mxu0 0.0
    %1928 = vmatprep.subr.mxu0 0.0
    %1929 = vmatpush1.msra.mxu0 0.0
    %1930 = vmatprep.subr.mxu0 0.0
    %1931 = vmatpush1.msra.mxu0 0.0
    %1932 = vmatprep.subr.mxu0 0.0
    %1933 = vmatpush1.msra.mxu0 0.0
    %1934 = vmatprep.subr.mxu0 0.0
    %1935 = vmatpush1.msra.mxu0 0.0
    %1936 = vmatprep.subr.mxu0 0.0
    %1937 = vmatpush1.msra.mxu0 0.0
    %1938 = vmatprep.subr.mxu0 0.0
    %1939 = vmatpush1.msra.mxu0 0.0
    %1940 = vmatprep.subr.mxu0 0.0
    %1941 = vmatpush1.msra.mxu0 0.0
    %1942 = vmatprep.subr.mxu0 0.0
    %1943 = vmatpush1.msra.mxu0 0.0
    %1944 = vmatprep.subr.mxu0 0.0
    %1945 = vmatpush1.msra.mxu0 0.0
    %1946 = vmatprep.subr.mxu0 0.0
    %1947 = vmatpush1.msra.mxu0 0.0
    %1948 = vmatprep.subr.mxu0 0.0
    %1949 = vmatpush1.msra.mxu0 0.0
    %1950 = vmatprep.subr.mxu0 0.0
    %1951 = vmatpush1.msra.mxu0 0.0
    %1952 = vmatprep.subr.mxu0 0.0
    %1953 = vmatpush1.msra.mxu0 0.0
    %1954 = vmatprep.subr.mxu0 0.0
    %1955 = vmatpush1.msra.mxu0 0.0
    %1956 = vmatprep.subr.mxu0 0.0
    %1957 = vmatpush1.msra.mxu0 0.0
    %1958 = vmatprep.subr.mxu0 0.0
    %1959 = vmatpush1.msra.mxu0 0.0
    %1960 = vmatprep.subr.mxu0 0.0
    %1961 = vmatpush1.msra.mxu0 0.0
    %1962 = vmatprep.subr.mxu0 0.0
    %1963 = vmatpush1.msra.mxu0 0.0
    %1964 = vmatprep.subr.mxu0 0.0
    %1965 = vmatpush1.msra.mxu0 0.0
    %1966 = vmatprep.subr.mxu0 0.0
    %1967 = vmatpush1.msra.mxu0 0.0
    %1968 = vmatprep.subr.mxu0 0.0
    %1969 = vmatpush1.msra.mxu0 0.0
    %1970 = vmatprep.subr.mxu0 0.0
    %1971 = vmatpush1.msra.mxu0 0.0
    %1972 = vmatprep.subr.mxu0 0.0
    %1973 = vmatpush1.msra.mxu0 0.0
    %1974 = vmatprep.subr.mxu0 0.0
    %1975 = vmatpush1.msra.mxu0 0.0
    %1976 = vmatprep.subr.mxu0 0.0
    %1977 = vmatpush1.msra.mxu0 0.0
    %1978 = vmatprep.mubr.f32.mxu0 0.0
    %1979 = vmatmul.mubr.f32.gmra.mrb[0].mxu0 %v1908
    %v1980 = vpop.f32.mrb[0].mxu0
    %v1981 = vadd.f32 0.0, %v1980
    %v1982 = vpop.f32.mrb[0].mxu0
    %1983 = vdwg.mxu0
    %v1984 = vsub.f32 %v1861, %v1981
    %v1985 = vmul.f32 %v1984, 1.442695
    %v1986 = vpow.pop %v1985
    %v1987 = vlaneseq
    %v1988 = vshrl.u32 %v1987, 7
    %v1989 = vsub.s32 0, %v1988
    %v1990 = vrot.slane %v1986, %v1989
    %v1991 = vmul.f32 %v1704, %v1990
    %v1992 = vsel %vm1870, %v1991, 0.0
    %1993 = vadd.xlane.f32.xlu0 %v1992
    %v1994 = vpop.xlane.xlu0 %1993
    %1995 = vxpose.xlu0.b32.start [1/16] %v1994, 128
    %1996 = vxpose.xlu0.b32.cont [2/16] 0.0, 128
    %1997 = vxpose.xlu0.b32.cont [3/16] 0.0, 128
    %1998 = vxpose.xlu0.b32.cont [4/16] 0.0, 128
    %1999 = vxpose.xlu0.b32.cont [5/16] 0.0, 128
    %2000 = vxpose.xlu0.b32.cont [6/16] 0.0, 128
    %2001 = vxpose.xlu0.b32.cont [7/16] 0.0, 128
    %2002 = vxpose.xlu0.b32.cont [8/16] 0.0, 128
    %2003 = vxpose.xlu0.b32.cont [9/16] 0.0, 128
    %2004 = vxpose.xlu0.b32.cont [10/16] 0.0, 128
    %2005 = vxpose.xlu0.b32.cont [11/16] 0.0, 128
    %2006 = vxpose.xlu0.b32.cont [12/16] 0.0, 128
    %2007 = vxpose.xlu0.b32.cont [13/16] 0.0, 128
    %2008 = vxpose.xlu0.b32.cont [14/16] 0.0, 128
    %2009 = vxpose.xlu0.b32.cont [15/16] 0.0, 128
    %2010 = vxpose.xlu0.b32.end [16/16] 0.0, 128
    %v2011 = vpop.trf.xlu0
    %v2012 = vpop.trf.xlu0
    %v2013 = vpop.trf.xlu0
    %v2014 = vpop.trf.xlu0
    %v2015 = vpop.trf.xlu0
    %v2016 = vpop.trf.xlu0
    %v2017 = vpop.trf.xlu0
    %v2018 = vpop.trf.xlu0
    %v2019 = vpop.trf.xlu0
    %v2020 = vpop.trf.xlu0
    %v2021 = vpop.trf.xlu0
    %v2022 = vpop.trf.xlu0
    %v2023 = vpop.trf.xlu0
    %v2024 = vpop.trf.xlu0
    %v2025 = vpop.trf.xlu0
    %v2026 = vpop.trf.xlu0
    %v2028 = vsel %vm1906, %v2011, 0
    %2030 = vmatprep.subr.mxu0 0.0
    %2031 = vmatpush1.msra.mxu0 %v1912
    %2032 = vmatprep.subr.mxu0 0.0
    %2033 = vmatpush1.msra.mxu0 0.0
    %2034 = vmatprep.subr.mxu0 0.0
    %2035 = vmatpush1.msra.mxu0 0.0
    %2036 = vmatprep.subr.mxu0 0.0
    %2037 = vmatpush1.msra.mxu0 0.0
    %2038 = vmatprep.subr.mxu0 0.0
    %2039 = vmatpush1.msra.mxu0 0.0
    %2040 = vmatprep.subr.mxu0 0.0
    %2041 = vmatpush1.msra.mxu0 0.0
    %2042 = vmatprep.subr.mxu0 0.0
    %2043 = vmatpush1.msra.mxu0 0.0
    %2044 = vmatprep.subr.mxu0 0.0
    %2045 = vmatpush1.msra.mxu0 0.0
    %2046 = vmatprep.subr.mxu0 0.0
    %2047 = vmatpush1.msra.mxu0 0.0
    %2048 = vmatprep.subr.mxu0 0.0
    %2049 = vmatpush1.msra.mxu0 0.0
    %2050 = vmatprep.subr.mxu0 0.0
    %2051 = vmatpush1.msra.mxu0 0.0
    %2052 = vmatprep.subr.mxu0 0.0
    %2053 = vmatpush1.msra.mxu0 0.0
    %2054 = vmatprep.subr.mxu0 0.0
    %2055 = vmatpush1.msra.mxu0 0.0
    %2056 = vmatprep.subr.mxu0 0.0
    %2057 = vmatpush1.msra.mxu0 0.0
    %2058 = vmatprep.subr.mxu0 0.0
    %2059 = vmatpush1.msra.mxu0 0.0
    %2060 = vmatprep.subr.mxu0 0.0
    %2061 = vmatpush1.msra.mxu0 0.0
    %2062 = vmatprep.subr.mxu0 0.0
    %2063 = vmatpush1.msra.mxu0 0.0
    %2064 = vmatprep.subr.mxu0 0.0
    %2065 = vmatpush1.msra.mxu0 0.0
    %2066 = vmatprep.subr.mxu0 0.0
    %2067 = vmatpush1.msra.mxu0 0.0
    %2068 = vmatprep.subr.mxu0 0.0
    %2069 = vmatpush1.msra.mxu0 0.0
    %2070 = vmatprep.subr.mxu0 0.0
    %2071 = vmatpush1.msra.mxu0 0.0
    %2072 = vmatprep.subr.mxu0 0.0
    %2073 = vmatpush1.msra.mxu0 0.0
    %2074 = vmatprep.subr.mxu0 0.0
    %2075 = vmatpush1.msra.mxu0 0.0
    %2076 = vmatprep.subr.mxu0 0.0
    %2077 = vmatpush1.msra.mxu0 0.0
    %2078 = vmatprep.subr.mxu0 0.0
    %2079 = vmatpush1.msra.mxu0 0.0
    %2080 = vmatprep.subr.mxu0 0.0
    %2081 = vmatpush1.msra.mxu0 0.0
    %2082 = vmatprep.subr.mxu0 0.0
    %2083 = vmatpush1.msra.mxu0 0.0
    %2084 = vmatprep.subr.mxu0 0.0
    %2085 = vmatpush1.msra.mxu0 0.0
    %2086 = vmatprep.subr.mxu0 0.0
    %2087 = vmatpush1.msra.mxu0 0.0
    %2088 = vmatprep.subr.mxu0 0.0
    %2089 = vmatpush1.msra.mxu0 0.0
    %2090 = vmatprep.subr.mxu0 0.0
    %2091 = vmatpush1.msra.mxu0 0.0
    %2092 = vmatprep.subr.mxu0 0.0
    %2093 = vmatpush1.msra.mxu0 0.0
    %2094 = vmatprep.mubr.f32.mxu0 0.0
    %2095 = vmatmul.mubr.f32.gmra.mrb[0].mxu0 %v2028
    %v2096 = vpop.f32.mrb[0].mxu0
    %v2097 = vadd.f32 0.0, %v2096
    %v2098 = vpop.f32.mrb[0].mxu0
    %2099 = vdwg.mxu0
    %v2100 = vmax.f32 %v2097, 1e-16
    %v2101 = vrcp.pop %v2100
    %v2102 = vmul.f32 %v1986, %v2101
    %vm2103 = vcmask 122880
    %2104 = vst.msk [vmem:[#allocation6] sm:$0x1] %vm2103, %v2102
    %v2105 = vlaneseq
    %v2106 = vshrl.u32 %v2105, 7
    %v2107 = vsub.s32 0, %v2106
    %v2108 = vrot.slane %v2102, %v2107
    %v2109 = vmul.f32 %v1704, %v2108
    %v2111 = vsel %vm407, %v2109, 0
    %2113 = vmatprep.subr.mxu0 0.0
    %2114 = vmatpush1.msra.mxu0 %v1702
    %2115 = vmatprep.subr.mxu0 0.0
    %2116 = vmatpush1.msra.mxu0 %v1703
    %2117 = vmatprep.subr.mxu0 0.0
    %2118 = vmatpush1.msra.mxu0 0.0
    %2119 = vmatprep.subr.mxu0 0.0
    %2120 = vmatpush1.msra.mxu0 0.0
    %2121 = vmatprep.subr.mxu0 0.0
    %2122 = vmatpush1.msra.mxu0 0.0
    %2123 = vmatprep.subr.mxu0 0.0
    %2124 = vmatpush1.msra.mxu0 0.0
    %2125 = vmatprep.subr.mxu0 0.0
    %2126 = vmatpush1.msra.mxu0 0.0
    %2127 = vmatprep.subr.mxu0 0.0
    %2128 = vmatpush1.msra.mxu0 0.0
    %2129 = vmatprep.subr.mxu0 0.0
    %2130 = vmatpush1.msra.mxu0 0.0
    %2131 = vmatprep.subr.mxu0 0.0
    %2132 = vmatpush1.msra.mxu0 0.0
    %2133 = vmatprep.subr.mxu0 0.0
    %2134 = vmatpush1.msra.mxu0 0.0
    %2135 = vmatprep.subr.mxu0 0.0
    %2136 = vmatpush1.msra.mxu0 0.0
    %2137 = vmatprep.subr.mxu0 0.0
    %2138 = vmatpush1.msra.mxu0 0.0
    %2139 = vmatprep.subr.mxu0 0.0
    %2140 = vmatpush1.msra.mxu0 0.0
    %2141 = vmatprep.subr.mxu0 0.0
    %2142 = vmatpush1.msra.mxu0 0.0
    %2143 = vmatprep.subr.mxu0 0.0
    %2144 = vmatpush1.msra.mxu0 0.0
    %2145 = vmatprep.subr.mxu0 0.0
    %2146 = vmatpush1.msra.mxu0 0.0
    %2147 = vmatprep.subr.mxu0 0.0
    %2148 = vmatpush1.msra.mxu0 0.0
    %2149 = vmatprep.subr.mxu0 0.0
    %2150 = vmatpush1.msra.mxu0 0.0
    %2151 = vmatprep.subr.mxu0 0.0
    %2152 = vmatpush1.msra.mxu0 0.0
    %2153 = vmatprep.subr.mxu0 0.0
    %2154 = vmatpush1.msra.mxu0 0.0
    %2155 = vmatprep.subr.mxu0 0.0
    %2156 = vmatpush1.msra.mxu0 0.0
    %2157 = vmatprep.subr.mxu0 0.0
    %2158 = vmatpush1.msra.mxu0 0.0
    %2159 = vmatprep.subr.mxu0 0.0
    %2160 = vmatpush1.msra.mxu0 0.0
    %2161 = vmatprep.subr.mxu0 0.0
    %2162 = vmatpush1.msra.mxu0 0.0
    %2163 = vmatprep.subr.mxu0 0.0
    %2164 = vmatpush1.msra.mxu0 0.0
    %2165 = vmatprep.subr.mxu0 0.0
    %2166 = vmatpush1.msra.mxu0 0.0
    %2167 = vmatprep.subr.mxu0 0.0
    %2168 = vmatpush1.msra.mxu0 0.0
    %2169 = vmatprep.subr.mxu0 0.0
    %2170 = vmatpush1.msra.mxu0 0.0
    %2171 = vmatprep.subr.mxu0 0.0
    %2172 = vmatpush1.msra.mxu0 0.0
    %2173 = vmatprep.subr.mxu0 0.0
    %2174 = vmatpush1.msra.mxu0 0.0
    %2175 = vmatprep.subr.mxu0 0.0
    %2176 = vmatpush1.msra.mxu0 0.0
    %2177 = vmatprep.mubr.f32.mxu0 0.0
    %2178 = vmatmul.mubr.f32.gmra.mrb[0].mxu0 %v2111
    %v2179 = vpop.f32.mrb[0].mxu0
    %v2180 = vadd.f32 0.0, %v2179
    %v2181 = vpop.f32.mrb[0].mxu0
    %2182 = vdwg.mxu0
    %v2183 = vld [vmem:[%s11] sm:$0xff]
    %v2184 = vld [vmem:[%s11 + $0x8] sm:$0xff]
    %v2185 = vld [vmem:[%s11 + $0x10] sm:$0xff]
    %v2186 = vld [vmem:[%s11 + $0x18] sm:$0xff]
    %v2187 = vld [vmem:[%s11 + $0x20] sm:$0xff]
    %v2188 = vld [vmem:[%s11 + $0x28] sm:$0xff]
    %v2189 = vld [vmem:[%s11 + $0x30] sm:$0xff]
    %v2190 = vld [vmem:[%s11 + $0x38] sm:$0xff]
    %v2191 = vld [vmem:[#allocation2] sm:$0x1]
    %v2193 = vlaneseq
    %v2194 = vshrl.u32 %v2193, 7
    %v2195 = vsub.s32 0, %v2194
    %v2196 = vrot.slane %v2191, %v2195
    %v2199 = vsel %vm131, %v2180, 0
    %2201 = vmatprep.subr.mxu0 0.0
    %2202 = vmatpush1.msra.mxu0 %v2183
    %2203 = vmatprep.subr.mxu0 0.0
    %2204 = vmatpush1.msra.mxu0 %v2184
    %2205 = vmatprep.subr.mxu0 0.0
    %2206 = vmatpush1.msra.mxu0 %v2185
    %2207 = vmatprep.subr.mxu0 0.0
    %2208 = vmatpush1.msra.mxu0 %v2186
    %2209 = vmatprep.subr.mxu0 0.0
    %2210 = vmatpush1.msra.mxu0 %v2187
    %2211 = vmatprep.subr.mxu0 0.0
    %2212 = vmatpush1.msra.mxu0 %v2188
    %2213 = vmatprep.subr.mxu0 0.0
    %2214 = vmatpush1.msra.mxu0 %v2189
    %2215 = vmatprep.subr.mxu0 0.0
    %2216 = vmatpush1.msra.mxu0 %v2190
    %2217 = vmatprep.subr.mxu0 0.0
    %2218 = vmatpush1.msra.mxu0 0.0
    %2219 = vmatprep.subr.mxu0 0.0
    %2220 = vmatpush1.msra.mxu0 0.0
    %2221 = vmatprep.subr.mxu0 0.0
    %2222 = vmatpush1.msra.mxu0 0.0
    %2223 = vmatprep.subr.mxu0 0.0
    %2224 = vmatpush1.msra.mxu0 0.0
    %2225 = vmatprep.subr.mxu0 0.0
    %2226 = vmatpush1.msra.mxu0 0.0
    %2227 = vmatprep.subr.mxu0 0.0
    %2228 = vmatpush1.msra.mxu0 0.0
    %2229 = vmatprep.subr.mxu0 0.0
    %2230 = vmatpush1.msra.mxu0 0.0
    %2231 = vmatprep.subr.mxu0 0.0
    %2232 = vmatpush1.msra.mxu0 0.0
    %2233 = vmatprep.subr.mxu0 0.0
    %2234 = vmatpush1.msra.mxu0 0.0
    %2235 = vmatprep.subr.mxu0 0.0
    %2236 = vmatpush1.msra.mxu0 0.0
    %2237 = vmatprep.subr.mxu0 0.0
    %2238 = vmatpush1.msra.mxu0 0.0
    %2239 = vmatprep.subr.mxu0 0.0
    %2240 = vmatpush1.msra.mxu0 0.0
    %2241 = vmatprep.subr.mxu0 0.0
    %2242 = vmatpush1.msra.mxu0 0.0
    %2243 = vmatprep.subr.mxu0 0.0
    %2244 = vmatpush1.msra.mxu0 0.0
    %2245 = vmatprep.subr.mxu0 0.0
    %2246 = vmatpush1.msra.mxu0 0.0
    %2247 = vmatprep.subr.mxu0 0.0
    %2248 = vmatpush1.msra.mxu0 0.0
    %2249 = vmatprep.subr.mxu0 0.0
    %2250 = vmatpush1.msra.mxu0 0.0
    %2251 = vmatprep.subr.mxu0 0.0
    %2252 = vmatpush1.msra.mxu0 0.0
    %2253 = vmatprep.subr.mxu0 0.0
    %2254 = vmatpush1.msra.mxu0 0.0
    %2255 = vmatprep.subr.mxu0 0.0
    %2256 = vmatpush1.msra.mxu0 0.0
    %2257 = vmatprep.subr.mxu0 0.0
    %2258 = vmatpush1.msra.mxu0 0.0
    %2259 = vmatprep.subr.mxu0 0.0
    %2260 = vmatpush1.msra.mxu0 0.0
    %2261 = vmatprep.subr.mxu0 0.0
    %2262 = vmatpush1.msra.mxu0 0.0
    %2263 = vmatprep.subr.mxu0 0.0
    %2264 = vmatpush1.msra.mxu0 0.0
    %2265 = vmatprep.mubr.f32.mxu0 0.0
    %2266 = vmatmul.mubr.f32.gmra.mrb[0].mxu0 %v2199
    %v2267 = vpop.f32.mrb[0].mxu0
    %v2268 = vadd.f32 %v2196, %v2267
    %v2269 = vpop.f32.mrb[0].mxu0
    %2270 = vdwg.mxu0
    %v2271 = vsub.f32 0.0, %v2268
    %v2272 = vmul.f32 %v2271, 1.442695
    %v2273 = vpow.pop %v2272
    %v2274 = vadd.f32 %v2273, 1.0
    %v2275 = vrcp.pop %v2274
    %v2276 = vmul.f32 1.0, %v2275
    %vm2277 = vcmask 1024
    %2278 = vst.msk [vmem:[%s13] sm:$0x3] %vm2277, %v2276
    // Predicated region
    $region58: #{graph_att_surv_forward.1} parent=1 // pred_check
      _
    $region59: #{graph_att_surv_forward.1} parent=1 // pred_check_branch
      %2280 = sbr.rel (0) target = $region61
    $region60: #{graph_att_surv_forward.1} parent=1 // pred_region
      _
    $region61: #{graph_att_surv_forward.1} parent=1 // pred_fallthru
      _
    // Predicated region
    $region62: #{graph_att_surv_forward.1} parent=1 // pred_check
      _
    $region63: #{graph_att_surv_forward.1} parent=1 // pred_check_branch
      %2282 = sbr.rel (0) target = $region65
    $region64: #{graph_att_surv_forward.1} parent=1 // pred_region
      %s2284 = ssub.s32 16, 16
      %2285 = vsyncadd [#allocation4], %s2284
      %s2287 = sshll.u32 [#allocation6], 4
      %s2288 = int_to_ptr.vmem [resolvable:$true] %s2287
      %2290 = dma.vmem_to_hbm [thread:$0]  %s2288, 16, %s14, [#allocation4]
    $region65: #{graph_att_surv_forward.1} parent=1 // pred_fallthru
      _
    // Predicated region
    $region66: #{graph_att_surv_forward.1} parent=1 // pred_check
      _
    $region67: #{graph_att_surv_forward.1} parent=1 // pred_check_branch
      %2292 = sbr.rel (0) target = $region69
    $region68: #{graph_att_surv_forward.1} parent=1 // pred_region
      _
    $region69: #{graph_att_surv_forward.1} parent=1 // pred_fallthru
      _
    // Predicated region
    $region70: #{graph_att_surv_forward.1} parent=1 // pred_check
      _
    $region71: #{graph_att_surv_forward.1} parent=1 // pred_check_branch
      %2294 = sbr.rel (0) target = $region73
    $region72: #{graph_att_surv_forward.1} parent=1 // pred_region
      %2295 = dma.done [#allocation4], 16
    $region73: #{graph_att_surv_forward.1} parent=1 // pred_fallthru
      _
    %2296 = vsyncpa [#allocation4], 1
    %2297 = vsyncpa [#allocation5], 1

</llo_original>
